<compile_context>
chip_gen: v7x
topology: tpu7x:2x2x1
jax: 0.10.0
libtpu: 0.0.40
codegen_flags: <defaults>
</compile_context>

<pallas_src>
import math

import jax
import jax.numpy as jnp
from jax.experimental import pallas as pl
from jax.experimental.pallas import tpu as pltpu

# Problem sizes (small, consistent with the module: nfeat -> nhid per head, 72 out classes)
N = 64          # number of graph nodes
NFEAT = 16      # input feature dim
NHID = 8        # hidden dim per attention head
NHEADS = 4      # number of attention heads
NOUT = 72       # GraphConvolution output dim (fixed to 72 in SpGAT)
NOUT_PAD = 128  # lane-dense padded output width (multiple of 128)


def spgat_kernel(x_ref, adj_ref, w_ref, a_src_ref, a_dst_ref, wg_ref, bg_ref, out_ref):
    """Fused SpGAT forward. All operands are VMEM-resident (small shapes, no grid)."""
    x = x_ref[...]                       # (N, NFEAT)
    adj = adj_ref[...]                   # (N, N)
    mask = adj != 0.0                    # edge pattern (== adj.coalesce().indices())

    # ---- batched per-head projection: one lane-dense matmul ----------------
    h_all = jnp.dot(x, w_ref[...], preferred_element_type=jnp.float32)          # (N, NHEADS*NHID)

    # ---- attention coefficients for ALL heads in two matmuls ---------------
    # a_src_ref is block-diagonal (NHEADS*NHID, NHEADS); a_dst_ref is (NHEADS, NHEADS*NHID).
    f_src_all = jnp.dot(h_all, a_src_ref[...],
                        preferred_element_type=jnp.float32)                      # (N, NHEADS)
    f_dst_all = jax.lax.dot_general(a_dst_ref[...], h_all, (((1,), (1,)), ((), ())),
                                    preferred_element_type=jnp.float32)          # (NHEADS, N)

    # ---- multi-head sparse attention (static unroll over 4 heads) ----------
    head_outs = []
    for hd in range(NHEADS):
        h = h_all[:, hd * NHID:(hd + 1) * NHID]                                  # (N, NHID)
        logits = f_src_all[:, hd:hd + 1] + f_dst_all[hd:hd + 1, :]               # (N, N)
        lrelu = jnp.where(logits >= 0.0, logits, 0.2 * logits)                   # LeakyReLU(0.2)
        # mask before exp: exp(-1e30) == 0 -> sparse pattern, no inf on non-edges
        edge_e = jnp.exp(jnp.where(mask, -lrelu, -1e30))                         # (N, N)
        rowsum = jnp.sum(edge_e, axis=1, keepdims=True)                          # (N, 1), f32
        # bf16 MXU operands (cast immediately before the dot; elementwise math stays f32)
        agg = jnp.dot(edge_e.astype(jnp.bfloat16), h.astype(jnp.bfloat16),
                      preferred_element_type=jnp.float32)                        # (N, NHID)
        h_prime = agg * pl.reciprocal(rowsum, approx=True)
        head_outs.append(jnp.where(h_prime > 0.0, h_prime, jnp.exp(h_prime) - 1.0))  # ELU

    # concat(dim=1) kept in registers -- no narrow masked stores to VMEM scratch
    heads = jnp.concatenate(head_outs, axis=1)                                   # (N, NHEADS*NHID)

    # ---- GraphConvolution head + LeakyReLU(0.01), lane-dense padded output --
    support = jnp.dot(heads, wg_ref[...], preferred_element_type=jnp.float32)    # (N, NOUT_PAD)
    # NOTE: kept f32 here (feeds the output directly / adj is 0-1); a bf16 cast is a further
    # modest MXU win on v6e/v7x at a small accuracy cost.
    gcn = jnp.dot(adj, support, preferred_element_type=jnp.float32) + bg_ref[...]
    out_ref[...] = jnp.where(gcn >= 0.0, gcn, 0.01 * gcn)


def spgat_forward(x, adj, w_all, a_src_bd, a_dst_bd, wg_pad, bg_pad):
    vmem = pl.BlockSpec(memory_space=pltpu.MemorySpace.VMEM)
    out = pl.pallas_call(
        spgat_kernel,
        out_shape=jax.ShapeDtypeStruct((N, NOUT_PAD), jnp.float32),
        in_specs=[vmem] * 7,
        out_specs=vmem,
    )(x, adj, w_all, a_src_bd, a_dst_bd, wg_pad, bg_pad)
    return out[:, :NOUT]                 # strip lane padding outside the kernel


def spgat_reference(x, adj, w, a_full, wg, bg):
    """Pure-JAX reference of the same math (per-head dense formulation)."""
    mask = adj != 0.0
    heads = []
    for hd in range(NHEADS):
        h = x @ w[hd]
        f_src = h @ a_full[hd, :NHID].reshape(NHID, 1)        # (N, 1)
        f_dst = (h @ a_full[hd, NHID:].reshape(NHID, 1)).T    # (1, N)
        logits = f_src + f_dst
        lrelu = jnp.where(logits >= 0, logits, 0.2 * logits)
        edge_e = jnp.where(mask, jnp.exp(-lrelu), 0.0)
        rowsum = edge_e.sum(axis=1, keepdims=True)
        h_prime = (edge_e @ h) / rowsum
        heads.append(jnp.where(h_prime > 0, h_prime, jnp.exp(h_prime) - 1.0))
    cat = jnp.concatenate(heads, axis=1)
    gcn = adj @ (cat @ wg) + bg
    return jnp.where(gcn >= 0, gcn, 0.01 * gcn)


if __name__ == "__main__":
    key = jax.random.PRNGKey(0)
    k_x, k_adj, k_w, k_a, k_wg, k_bg = jax.random.split(key, 6)

    # --- deterministic parameter init (matches shapes in __init__) ----------
    # SpGraphAttentionLayer.W : xavier_normal_, gain=1.414
    std_w = 1.414 * math.sqrt(2.0 / (NFEAT + NHID))
    w = std_w * jax.random.normal(k_w, (NHEADS, NFEAT, NHID), jnp.float32)

    # SpGraphAttentionLayer.a : (1, 2*NHID), xavier_normal_, gain=1.414
    std_a = 1.414 * math.sqrt(2.0 / (1 + 2 * NHID))
    a_full = std_a * jax.random.normal(k_a, (NHEADS, 2 * NHID), jnp.float32)

    # GraphConvolution(nhid*nheads, 72): uniform(-1/sqrt(out), 1/sqrt(out))
    stdv = 1.0 / math.sqrt(NOUT)
    wg = jax.random.uniform(k_wg, (NHEADS * NHID, NOUT), jnp.float32, -stdv, stdv)
    bg = jax.random.uniform(k_bg, (1, NOUT), jnp.float32, -stdv, stdv)

    # --- lane-dense parameter repack for the kernel (host side) -------------
    # W: (NHEADS, NFEAT, NHID) -> (NFEAT, NHEADS*NHID); column block h == head h
    w_all = jnp.transpose(w, (1, 0, 2)).reshape(NFEAT, NHEADS * NHID)
    # a: stacked block-diagonal src (32,4) and dst (4,32) matrices
    a_src_bd = jnp.zeros((NHEADS * NHID, NHEADS), jnp.float32)
    a_dst_bd = jnp.zeros((NHEADS, NHEADS * NHID), jnp.float32)
    for hd in range(NHEADS):
        a_src_bd = a_src_bd.at[hd * NHID:(hd + 1) * NHID, hd].set(a_full[hd, :NHID])
        a_dst_bd = a_dst_bd.at[hd, hd * NHID:(hd + 1) * NHID].set(a_full[hd, NHID:])
    # GCN weights/bias padded to 128 output lanes
    wg_pad = jnp.pad(wg, ((0, 0), (0, NOUT_PAD - NOUT)))
    bg_pad = jnp.pad(bg, ((0, 0), (0, NOUT_PAD - NOUT)))

    # --- inputs --------------------------------------------------------------
    x = jax.random.normal(k_x, (N, NFEAT), jnp.float32)
    # sparse-ish adjacency: random edges + self loops (guarantees rowsum > 0)
    adj = (jax.random.uniform(k_adj, (N, N)) < 0.10).astype(jnp.float32)
    adj = jnp.maximum(adj, jnp.eye(N, dtype=jnp.float32))

    out = spgat_forward(x, adj, w_all, a_src_bd, a_dst_bd, wg_pad, bg_pad)
    out = jax.block_until_ready(out)

    ref = spgat_reference(x, adj, w, a_full, wg, bg)
    assert out.shape == (N, NOUT)
    assert jnp.allclose(out, ref, rtol=1e-2, atol=1e-2), "mismatch vs JAX reference"

    print("KERNEL_OK")
</pallas_src>

<mosaic_0001>
module attributes {stable_mosaic.version = 11 : i64} {
  func.func @spgat_kernel(%arg0: memref<64x16xf32, #tpu.memory_space<vmem>>, %arg1: memref<64x64xf32, #tpu.memory_space<vmem>>, %arg2: memref<16x32xf32, #tpu.memory_space<vmem>>, %arg3: memref<32x4xf32, #tpu.memory_space<vmem>>, %arg4: memref<4x32xf32, #tpu.memory_space<vmem>>, %arg5: memref<32x128xf32, #tpu.memory_space<vmem>>, %arg6: memref<1x128xf32, #tpu.memory_space<vmem>>, %arg7: memref<64x128xf32, #tpu.memory_space<vmem>>) attributes {dimension_semantics = [], scalar_prefetch = 0 : i64, scratch_operands = 0 : i64, tpu.core_type = #tpu.core_type<tc>} {
    %c0 = arith.constant 0 : index
    %c0_0 = arith.constant 0 : index
    %0 = vector.load %arg0[%c0, %c0_0] : memref<64x16xf32, #tpu.memory_space<vmem>>, vector<64x16xf32>
    %c0_1 = arith.constant 0 : index
    %c0_2 = arith.constant 0 : index
    %1 = vector.load %arg1[%c0_1, %c0_2] : memref<64x64xf32, #tpu.memory_space<vmem>>, vector<64x64xf32>
    %cst = arith.constant 0.000000e+00 : f32
    %2 = vector.broadcast %cst : f32 to vector<64x64xf32>
    %3 = arith.cmpf one, %1, %2 : vector<64x64xf32>
    %c0_3 = arith.constant 0 : index
    %c0_4 = arith.constant 0 : index
    %4 = vector.load %arg2[%c0_3, %c0_4] : memref<16x32xf32, #tpu.memory_space<vmem>>, vector<16x32xf32>
    %cst_5 = arith.constant dense<0.000000e+00> : vector<64x32xf32>
    %5 = tpu.matmul %0, %4, %cst_5 {dimension_numbers = #tpu.dot_dimension_numbers<[1], [0], [0], [1], [0, 0, 1, 1], [], []>} : vector<64x16xf32>, vector<16x32xf32>, vector<64x32xf32> -> vector<64x32xf32>
    %c0_6 = arith.constant 0 : index
    %c0_7 = arith.constant 0 : index
    %6 = vector.load %arg3[%c0_6, %c0_7] : memref<32x4xf32, #tpu.memory_space<vmem>>, vector<32x4xf32>
    %cst_8 = arith.constant dense<0.000000e+00> : vector<64x4xf32>
    %7 = tpu.matmul %5, %6, %cst_8 {dimension_numbers = #tpu.dot_dimension_numbers<[1], [0], [0], [1], [0, 0, 1, 1], [], []>} : vector<64x32xf32>, vector<32x4xf32>, vector<64x4xf32> -> vector<64x4xf32>
    %c0_9 = arith.constant 0 : index
    %c0_10 = arith.constant 0 : index
    %8 = vector.load %arg4[%c0_9, %c0_10] : memref<4x32xf32, #tpu.memory_space<vmem>>, vector<4x32xf32>
    %cst_11 = arith.constant dense<0.000000e+00> : vector<4x64xf32>
    %9 = tpu.matmul %8, %5, %cst_11 {dimension_numbers = #tpu.dot_dimension_numbers<[1], [1], [0], [0], [0, 0, 1, 0], [], []>} : vector<4x32xf32>, vector<64x32xf32>, vector<4x64xf32> -> vector<4x64xf32>
    %10 = vector.extract_strided_slice %5 {offsets = [0, 0], sizes = [64, 8], strides = [1, 1]} : vector<64x32xf32> to vector<64x8xf32>
    %11 = vector.extract_strided_slice %7 {offsets = [0, 0], sizes = [64, 1], strides = [1, 1]} : vector<64x4xf32> to vector<64x1xf32>
    %12 = vector.extract_strided_slice %9 {offsets = [0, 0], sizes = [1, 64], strides = [1, 1]} : vector<4x64xf32> to vector<1x64xf32>
    %13 = vector.broadcast %11 : vector<64x1xf32> to vector<64x64xf32>
    %14 = vector.broadcast %12 : vector<1x64xf32> to vector<64x64xf32>
    %15 = arith.addf %13, %14 : vector<64x64xf32>
    %cst_12 = arith.constant 0.000000e+00 : f32
    %16 = vector.broadcast %cst_12 : f32 to vector<64x64xf32>
    %17 = arith.cmpf oge, %15, %16 : vector<64x64xf32>
    %cst_13 = arith.constant 2.000000e-01 : f32
    %18 = vector.broadcast %cst_13 : f32 to vector<64x64xf32>
    %19 = arith.mulf %18, %15 : vector<64x64xf32>
    %20 = arith.select %17, %15, %19 : vector<64x64xi1>, vector<64x64xf32>
    %cst_14 = arith.constant 0.000000e+00 : f32
    %21 = vector.broadcast %cst_14 : f32 to vector<64x64xf32>
    %22 = arith.subf %21, %20 : vector<64x64xf32>
    %cst_15 = arith.constant -1.000000e+30 : f32
    %23 = vector.broadcast %cst_15 : f32 to vector<64x64xf32>
    %24 = arith.select %3, %22, %23 : vector<64x64xi1>, vector<64x64xf32>
    %25 = math.exp %24 : vector<64x64xf32>
    %cst_16 = arith.constant dense<0.000000e+00> : vector<64xf32>
    %26 = vector.multi_reduction <add>, %25, %cst_16 [1] : vector<64x64xf32> to vector<64xf32>
    %27 = vector.shape_cast %26 : vector<64xf32> to vector<64x1xf32>
    %28 = arith.truncf %25 : vector<64x64xf32> to vector<64x64xbf16>
    %29 = arith.truncf %10 : vector<64x8xf32> to vector<64x8xbf16>
    %cst_17 = arith.constant dense<0.000000e+00> : vector<64x8xf32>
    %30 = tpu.matmul %28, %29, %cst_17 {dimension_numbers = #tpu.dot_dimension_numbers<[1], [0], [0], [1], [0, 0, 1, 1], [], []>} : vector<64x64xbf16>, vector<64x8xbf16>, vector<64x8xf32> -> vector<64x8xf32>
    %31 = tpu.reciprocal %27 {approx = true} : vector<64x1xf32> -> vector<64x1xf32>
    %32 = vector.broadcast %31 : vector<64x1xf32> to vector<64x8xf32>
    %33 = arith.mulf %30, %32 : vector<64x8xf32>
    %cst_18 = arith.constant 0.000000e+00 : f32
    %34 = vector.broadcast %cst_18 : f32 to vector<64x8xf32>
    %35 = arith.cmpf ogt, %33, %34 : vector<64x8xf32>
    %36 = math.exp %33 : vector<64x8xf32>
    %cst_19 = arith.constant 1.000000e+00 : f32
    %37 = vector.broadcast %cst_19 : f32 to vector<64x8xf32>
    %38 = arith.subf %36, %37 : vector<64x8xf32>
    %39 = arith.select %35, %33, %38 : vector<64x8xi1>, vector<64x8xf32>
    %40 = vector.extract_strided_slice %5 {offsets = [0, 8], sizes = [64, 8], strides = [1, 1]} : vector<64x32xf32> to vector<64x8xf32>
    %41 = vector.extract_strided_slice %7 {offsets = [0, 1], sizes = [64, 1], strides = [1, 1]} : vector<64x4xf32> to vector<64x1xf32>
    %42 = vector.extract_strided_slice %9 {offsets = [1, 0], sizes = [1, 64], strides = [1, 1]} : vector<4x64xf32> to vector<1x64xf32>
    %43 = vector.broadcast %41 : vector<64x1xf32> to vector<64x64xf32>
    %44 = vector.broadcast %42 : vector<1x64xf32> to vector<64x64xf32>
    %45 = arith.addf %43, %44 : vector<64x64xf32>
    %cst_20 = arith.constant 0.000000e+00 : f32
    %46 = vector.broadcast %cst_20 : f32 to vector<64x64xf32>
    %47 = arith.cmpf oge, %45, %46 : vector<64x64xf32>
    %cst_21 = arith.constant 2.000000e-01 : f32
    %48 = vector.broadcast %cst_21 : f32 to vector<64x64xf32>
    %49 = arith.mulf %48, %45 : vector<64x64xf32>
    %50 = arith.select %47, %45, %49 : vector<64x64xi1>, vector<64x64xf32>
    %cst_22 = arith.constant 0.000000e+00 : f32
    %51 = vector.broadcast %cst_22 : f32 to vector<64x64xf32>
    %52 = arith.subf %51, %50 : vector<64x64xf32>
    %cst_23 = arith.constant -1.000000e+30 : f32
    %53 = vector.broadcast %cst_23 : f32 to vector<64x64xf32>
    %54 = arith.select %3, %52, %53 : vector<64x64xi1>, vector<64x64xf32>
    %55 = math.exp %54 : vector<64x64xf32>
    %cst_24 = arith.constant dense<0.000000e+00> : vector<64xf32>
    %56 = vector.multi_reduction <add>, %55, %cst_24 [1] : vector<64x64xf32> to vector<64xf32>
    %57 = vector.shape_cast %56 : vector<64xf32> to vector<64x1xf32>
    %58 = arith.truncf %55 : vector<64x64xf32> to vector<64x64xbf16>
    %59 = arith.truncf %40 : vector<64x8xf32> to vector<64x8xbf16>
    %cst_25 = arith.constant dense<0.000000e+00> : vector<64x8xf32>
    %60 = tpu.matmul %58, %59, %cst_25 {dimension_numbers = #tpu.dot_dimension_numbers<[1], [0], [0], [1], [0, 0, 1, 1], [], []>} : vector<64x64xbf16>, vector<64x8xbf16>, vector<64x8xf32> -> vector<64x8xf32>
    %61 = tpu.reciprocal %57 {approx = true} : vector<64x1xf32> -> vector<64x1xf32>
    %62 = vector.broadcast %61 : vector<64x1xf32> to vector<64x8xf32>
    %63 = arith.mulf %60, %62 : vector<64x8xf32>
    %cst_26 = arith.constant 0.000000e+00 : f32
    %64 = vector.broadcast %cst_26 : f32 to vector<64x8xf32>
    %65 = arith.cmpf ogt, %63, %64 : vector<64x8xf32>
    %66 = math.exp %63 : vector<64x8xf32>
    %cst_27 = arith.constant 1.000000e+00 : f32
    %67 = vector.broadcast %cst_27 : f32 to vector<64x8xf32>
    %68 = arith.subf %66, %67 : vector<64x8xf32>
    %69 = arith.select %65, %63, %68 : vector<64x8xi1>, vector<64x8xf32>
    %70 = vector.extract_strided_slice %5 {offsets = [0, 16], sizes = [64, 8], strides = [1, 1]} : vector<64x32xf32> to vector<64x8xf32>
    %71 = vector.extract_strided_slice %7 {offsets = [0, 2], sizes = [64, 1], strides = [1, 1]} : vector<64x4xf32> to vector<64x1xf32>
    %72 = vector.extract_strided_slice %9 {offsets = [2, 0], sizes = [1, 64], strides = [1, 1]} : vector<4x64xf32> to vector<1x64xf32>
    %73 = vector.broadcast %71 : vector<64x1xf32> to vector<64x64xf32>
    %74 = vector.broadcast %72 : vector<1x64xf32> to vector<64x64xf32>
    %75 = arith.addf %73, %74 : vector<64x64xf32>
    %cst_28 = arith.constant 0.000000e+00 : f32
    %76 = vector.broadcast %cst_28 : f32 to vector<64x64xf32>
    %77 = arith.cmpf oge, %75, %76 : vector<64x64xf32>
    %cst_29 = arith.constant 2.000000e-01 : f32
    %78 = vector.broadcast %cst_29 : f32 to vector<64x64xf32>
    %79 = arith.mulf %78, %75 : vector<64x64xf32>
    %80 = arith.select %77, %75, %79 : vector<64x64xi1>, vector<64x64xf32>
    %cst_30 = arith.constant 0.000000e+00 : f32
    %81 = vector.broadcast %cst_30 : f32 to vector<64x64xf32>
    %82 = arith.subf %81, %80 : vector<64x64xf32>
    %cst_31 = arith.constant -1.000000e+30 : f32
    %83 = vector.broadcast %cst_31 : f32 to vector<64x64xf32>
    %84 = arith.select %3, %82, %83 : vector<64x64xi1>, vector<64x64xf32>
    %85 = math.exp %84 : vector<64x64xf32>
    %cst_32 = arith.constant dense<0.000000e+00> : vector<64xf32>
    %86 = vector.multi_reduction <add>, %85, %cst_32 [1] : vector<64x64xf32> to vector<64xf32>
    %87 = vector.shape_cast %86 : vector<64xf32> to vector<64x1xf32>
    %88 = arith.truncf %85 : vector<64x64xf32> to vector<64x64xbf16>
    %89 = arith.truncf %70 : vector<64x8xf32> to vector<64x8xbf16>
    %cst_33 = arith.constant dense<0.000000e+00> : vector<64x8xf32>
    %90 = tpu.matmul %88, %89, %cst_33 {dimension_numbers = #tpu.dot_dimension_numbers<[1], [0], [0], [1], [0, 0, 1, 1], [], []>} : vector<64x64xbf16>, vector<64x8xbf16>, vector<64x8xf32> -> vector<64x8xf32>
    %91 = tpu.reciprocal %87 {approx = true} : vector<64x1xf32> -> vector<64x1xf32>
    %92 = vector.broadcast %91 : vector<64x1xf32> to vector<64x8xf32>
    %93 = arith.mulf %90, %92 : vector<64x8xf32>
    %cst_34 = arith.constant 0.000000e+00 : f32
    %94 = vector.broadcast %cst_34 : f32 to vector<64x8xf32>
    %95 = arith.cmpf ogt, %93, %94 : vector<64x8xf32>
    %96 = math.exp %93 : vector<64x8xf32>
    %cst_35 = arith.constant 1.000000e+00 : f32
    %97 = vector.broadcast %cst_35 : f32 to vector<64x8xf32>
    %98 = arith.subf %96, %97 : vector<64x8xf32>
    %99 = arith.select %95, %93, %98 : vector<64x8xi1>, vector<64x8xf32>
    %100 = vector.extract_strided_slice %5 {offsets = [0, 24], sizes = [64, 8], strides = [1, 1]} : vector<64x32xf32> to vector<64x8xf32>
    %101 = vector.extract_strided_slice %7 {offsets = [0, 3], sizes = [64, 1], strides = [1, 1]} : vector<64x4xf32> to vector<64x1xf32>
    %102 = vector.extract_strided_slice %9 {offsets = [3, 0], sizes = [1, 64], strides = [1, 1]} : vector<4x64xf32> to vector<1x64xf32>
    %103 = vector.broadcast %101 : vector<64x1xf32> to vector<64x64xf32>
    %104 = vector.broadcast %102 : vector<1x64xf32> to vector<64x64xf32>
    %105 = arith.addf %103, %104 : vector<64x64xf32>
    %cst_36 = arith.constant 0.000000e+00 : f32
    %106 = vector.broadcast %cst_36 : f32 to vector<64x64xf32>
    %107 = arith.cmpf oge, %105, %106 : vector<64x64xf32>
    %cst_37 = arith.constant 2.000000e-01 : f32
    %108 = vector.broadcast %cst_37 : f32 to vector<64x64xf32>
    %109 = arith.mulf %108, %105 : vector<64x64xf32>
    %110 = arith.select %107, %105, %109 : vector<64x64xi1>, vector<64x64xf32>
    %cst_38 = arith.constant 0.000000e+00 : f32
    %111 = vector.broadcast %cst_38 : f32 to vector<64x64xf32>
    %112 = arith.subf %111, %110 : vector<64x64xf32>
    %cst_39 = arith.constant -1.000000e+30 : f32
    %113 = vector.broadcast %cst_39 : f32 to vector<64x64xf32>
    %114 = arith.select %3, %112, %113 : vector<64x64xi1>, vector<64x64xf32>
    %115 = math.exp %114 : vector<64x64xf32>
    %cst_40 = arith.constant dense<0.000000e+00> : vector<64xf32>
    %116 = vector.multi_reduction <add>, %115, %cst_40 [1] : vector<64x64xf32> to vector<64xf32>
    %117 = vector.shape_cast %116 : vector<64xf32> to vector<64x1xf32>
    %118 = arith.truncf %115 : vector<64x64xf32> to vector<64x64xbf16>
    %119 = arith.truncf %100 : vector<64x8xf32> to vector<64x8xbf16>
    %cst_41 = arith.constant dense<0.000000e+00> : vector<64x8xf32>
    %120 = tpu.matmul %118, %119, %cst_41 {dimension_numbers = #tpu.dot_dimension_numbers<[1], [0], [0], [1], [0, 0, 1, 1], [], []>} : vector<64x64xbf16>, vector<64x8xbf16>, vector<64x8xf32> -> vector<64x8xf32>
    %121 = tpu.reciprocal %117 {approx = true} : vector<64x1xf32> -> vector<64x1xf32>
    %122 = vector.broadcast %121 : vector<64x1xf32> to vector<64x8xf32>
    %123 = arith.mulf %120, %122 : vector<64x8xf32>
    %cst_42 = arith.constant 0.000000e+00 : f32
    %124 = vector.broadcast %cst_42 : f32 to vector<64x8xf32>
    %125 = arith.cmpf ogt, %123, %124 : vector<64x8xf32>
    %126 = math.exp %123 : vector<64x8xf32>
    %cst_43 = arith.constant 1.000000e+00 : f32
    %127 = vector.broadcast %cst_43 : f32 to vector<64x8xf32>
    %128 = arith.subf %126, %127 : vector<64x8xf32>
    %129 = arith.select %125, %123, %128 : vector<64x8xi1>, vector<64x8xf32>
    %130 = tpu.concatenate %39, %69, %99, %129 in 1 : vector<64x8xf32>, vector<64x8xf32>, vector<64x8xf32>, vector<64x8xf32> -> vector<64x32xf32>
    %c0_44 = arith.constant 0 : index
    %c0_45 = arith.constant 0 : index
    %131 = vector.load %arg5[%c0_44, %c0_45] : memref<32x128xf32, #tpu.memory_space<vmem>>, vector<32x128xf32>
    %cst_46 = arith.constant dense<0.000000e+00> : vector<64x128xf32>
    %132 = tpu.matmul %130, %131, %cst_46 {dimension_numbers = #tpu.dot_dimension_numbers<[1], [0], [0], [1], [0, 0, 1, 1], [], []>} : vector<64x32xf32>, vector<32x128xf32>, vector<64x128xf32> -> vector<64x128xf32>
    %cst_47 = arith.constant dense<0.000000e+00> : vector<64x128xf32>
    %133 = tpu.matmul %1, %132, %cst_47 {dimension_numbers = #tpu.dot_dimension_numbers<[1], [0], [0], [1], [0, 0, 1, 1], [], []>} : vector<64x64xf32>, vector<64x128xf32>, vector<64x128xf32> -> vector<64x128xf32>
    %c0_48 = arith.constant 0 : index
    %c0_49 = arith.constant 0 : index
    %134 = vector.load %arg6[%c0_48, %c0_49] : memref<1x128xf32, #tpu.memory_space<vmem>>, vector<1x128xf32>
    %135 = vector.broadcast %134 : vector<1x128xf32> to vector<64x128xf32>
    %136 = arith.addf %133, %135 : vector<64x128xf32>
    %cst_50 = arith.constant 0.000000e+00 : f32
    %137 = vector.broadcast %cst_50 : f32 to vector<64x128xf32>
    %138 = arith.cmpf oge, %136, %137 : vector<64x128xf32>
    %cst_51 = arith.constant 0.00999999977 : f32
    %139 = vector.broadcast %cst_51 : f32 to vector<64x128xf32>
    %140 = arith.mulf %139, %136 : vector<64x128xf32>
    %141 = arith.select %138, %136, %140 : vector<64x128xi1>, vector<64x128xf32>
    %c0_52 = arith.constant 0 : index
    %c0_53 = arith.constant 0 : index
    %142 = vector.load %arg7[%c0_52, %c0_53] : memref<64x128xf32, #tpu.memory_space<vmem>>, vector<64x128xf32>
    tpu.vector_store %arg7[%c0_52, %c0_53], %141 {strides = array<i32>} : memref<64x128xf32, #tpu.memory_space<vmem>>, vector<64x128xf32>,
    return
  }
}

</mosaic_0001>

<llo_original>
// kernel: tpu_custom_call.1
$region0: #{tpu_custom_call.1}
  #allocation0 [shape = 'u32[]', space=smem, size = 0x4, offset = 0x4, fixed_abs, tag = 'smem constant byte address 0x4 - core index']
  #allocation1 [shape = 'u32[144,128]{1,0:T(1,128)}', space=vmem, size = 0x12000, scoped, tag = 'internal scratch']
  %s0 = inlined_call_operand.vmem [shape: f32[64,16], index: 0, kind: input, shape index: {}]
  %s1 = inlined_call_operand.vmem [shape: f32[64,64], index: 1, kind: input, shape index: {}]
  %s2 = inlined_call_operand.vmem [shape: f32[16,32], index: 2, kind: input, shape index: {}]
  %s3 = inlined_call_operand.vmem [shape: f32[32,4], index: 3, kind: input, shape index: {}]
  %s4 = inlined_call_operand.vmem [shape: f32[4,32], index: 4, kind: input, shape index: {}]
  %s5 = inlined_call_operand.vmem [shape: f32[32,128], index: 5, kind: input, shape index: {}]
  %s6 = inlined_call_operand.vmem [shape: f32[1,128], index: 6, kind: input, shape index: {}]
  %s7 = inlined_call_operand.hbm [shape: f32[64,128], index: 7, kind: output, shape index: {}]
  %s8 = sld [smem:[#allocation0]]
  $region38: #{tpu_custom_call.1} parent=0
    _
  %s10 = ssub.s32 1, %s8
  %s11 = scalar_select 0, %s10, %s8
  $region1: #{tpu_custom_call.1} parent=0
    #allocation2 [shape = 'u8[32768]{0}', space=vmem, size = 0x8000, scoped, tag = 'output window, operand 0, single buffered']
    #allocation3 [shape = 's32[1]{0}', space=sflag, size = 0x4, scoped, tag = 'scoped memory for tpu_custom_call.1']
    %12 = vsyncpa [#allocation3], 0
    // Predicated region
    $region2: #{tpu_custom_call.1} parent=1 // pred_check
      _
    $region3: #{tpu_custom_call.1} parent=1 // pred_check_branch
      %14 = sbr.rel (0) target = $region5
    $region4: #{tpu_custom_call.1} parent=1 // pred_region
      _
    $region5: #{tpu_custom_call.1} parent=1 // pred_fallthru
      _
    // Predicated region
    $region6: #{tpu_custom_call.1} parent=1 // pred_check
      _
    $region7: #{tpu_custom_call.1} parent=1 // pred_check_branch
      %16 = sbr.rel (0) target = $region9
    $region8: #{tpu_custom_call.1} parent=1 // pred_region
      _
    $region9: #{tpu_custom_call.1} parent=1 // pred_fallthru
      _
    // Predicated region
    $region10: #{tpu_custom_call.1} parent=1 // pred_check
      _
    $region11: #{tpu_custom_call.1} parent=1 // pred_check_branch
      %18 = sbr.rel (0) target = $region13
    $region12: #{tpu_custom_call.1} parent=1 // pred_region
      _
    $region13: #{tpu_custom_call.1} parent=1 // pred_fallthru
      _
    // Predicated region
    $region14: #{tpu_custom_call.1} parent=1 // pred_check
      _
    $region15: #{tpu_custom_call.1} parent=1 // pred_check_branch
      %20 = sbr.rel (0) target = $region17
    $region16: #{tpu_custom_call.1} parent=1 // pred_region
      _
    $region17: #{tpu_custom_call.1} parent=1 // pred_fallthru
      _
    // Predicated region
    $region18: #{tpu_custom_call.1} parent=1 // pred_check
      _
    $region19: #{tpu_custom_call.1} parent=1 // pred_check_branch
      %22 = sbr.rel (0) target = $region21
    $region20: #{tpu_custom_call.1} parent=1 // pred_region
      _
    $region21: #{tpu_custom_call.1} parent=1 // pred_fallthru
      _
    // Predicated region
    $region22: #{tpu_custom_call.1} parent=1 // pred_check
      _
    $region23: #{tpu_custom_call.1} parent=1 // pred_check_branch
      %24 = sbr.rel (0) target = $region25
    $region24: #{tpu_custom_call.1} parent=1 // pred_region
      _
    $region25: #{tpu_custom_call.1} parent=1 // pred_fallthru
      _
    // Predicated region
    $region26: #{tpu_custom_call.1} parent=1 // pred_check
      _
    $region27: #{tpu_custom_call.1} parent=1 // pred_check_branch
      %26 = sbr.rel (0) target = $region29
    $region28: #{tpu_custom_call.1} parent=1 // pred_region
      _
    $region29: #{tpu_custom_call.1} parent=1 // pred_fallthru
      _
    %v28 = vld [vmem:[%s0] sm:$0xff]
    %v29 = vld [vmem:[%s0 + $0x8] sm:$0xff]
    %v30 = vld [vmem:[%s0 + $0x10] sm:$0xff]
    %v31 = vld [vmem:[%s0 + $0x18] sm:$0xff]
    %v32 = vld [vmem:[%s0 + $0x20] sm:$0xff]
    %v33 = vld [vmem:[%s0 + $0x28] sm:$0xff]
    %v34 = vld [vmem:[%s0 + $0x30] sm:$0xff]
    %v35 = vld [vmem:[%s0 + $0x38] sm:$0xff]
    %v36 = vld [vmem:[%s1] sm:$0xff]
    %v37 = vld [vmem:[%s1 + $0x8] sm:$0xff]
    %v38 = vld [vmem:[%s1 + $0x10] sm:$0xff]
    %v39 = vld [vmem:[%s1 + $0x18] sm:$0xff]
    %v40 = vld [vmem:[%s1 + $0x20] sm:$0xff]
    %v41 = vld [vmem:[%s1 + $0x28] sm:$0xff]
    %v42 = vld [vmem:[%s1 + $0x30] sm:$0xff]
    %v43 = vld [vmem:[%s1 + $0x38] sm:$0xff]
    %vm44 = vcmp.ne.f32.partialorder %v36, 0.0
    %vm45 = vcmp.ne.f32.partialorder %v37, 0.0
    %vm46 = vcmp.ne.f32.partialorder %v38, 0.0
    %vm47 = vcmp.ne.f32.partialorder %v39, 0.0
    %vm48 = vcmp.ne.f32.partialorder %v40, 0.0
    %vm49 = vcmp.ne.f32.partialorder %v41, 0.0
    %vm50 = vcmp.ne.f32.partialorder %v42, 0.0
    %vm51 = vcmp.ne.f32.partialorder %v43, 0.0
    %v52 = vld [vmem:[%s2] sm:$0xff]
    %v53 = vld [vmem:[%s2 + $0x8] sm:$0xff]
    %vm54 = vcmask 130048
    %v56 = vsel %vm54, %v28, 0
    %v59 = vsel %vm54, %v29, 0
    %v62 = vsel %vm54, %v30, 0
    %v65 = vsel %vm54, %v31, 0
    %v68 = vsel %vm54, %v32, 0
    %v71 = vsel %vm54, %v33, 0
    %v74 = vsel %vm54, %v34, 0
    %v77 = vsel %vm54, %v35, 0
    %79 = vmatprep.subr.mxu0 0.0
    %80 = vmatpush1.msra.mxu0 %v52
    %81 = vmatprep.subr.mxu0 0.0
    %82 = vmatpush1.msra.mxu0 %v53
    %83 = vmatprep.subr.mxu0 0.0
    %84 = vmatpush1.msra.mxu0 0.0
    %85 = vmatprep.subr.mxu0 0.0
    %86 = vmatpush1.msra.mxu0 0.0
    %87 = vmatprep.subr.mxu0 0.0
    %88 = vmatpush1.msra.mxu0 0.0
    %89 = vmatprep.subr.mxu0 0.0
    %90 = vmatpush1.msra.mxu0 0.0
    %91 = vmatprep.subr.mxu0 0.0
    %92 = vmatpush1.msra.mxu0 0.0
    %93 = vmatprep.subr.mxu0 0.0
    %94 = vmatpush1.msra.mxu0 0.0
    %95 = vmatprep.subr.mxu0 0.0
    %96 = vmatpush1.msra.mxu0 0.0
    %97 = vmatprep.subr.mxu0 0.0
    %98 = vmatpush1.msra.mxu0 0.0
    %99 = vmatprep.subr.mxu0 0.0
    %100 = vmatpush1.msra.mxu0 0.0
    %101 = vmatprep.subr.mxu0 0.0
    %102 = vmatpush1.msra.mxu0 0.0
    %103 = vmatprep.subr.mxu0 0.0
    %104 = vmatpush1.msra.mxu0 0.0
    %105 = vmatprep.subr.mxu0 0.0
    %106 = vmatpush1.msra.mxu0 0.0
    %107 = vmatprep.subr.mxu0 0.0
    %108 = vmatpush1.msra.mxu0 0.0
    %109 = vmatprep.subr.mxu0 0.0
    %110 = vmatpush1.msra.mxu0 0.0
    %111 = vmatprep.subr.mxu0 0.0
    %112 = vmatpush1.msra.mxu0 0.0
    %113 = vmatprep.subr.mxu0 0.0
    %114 = vmatpush1.msra.mxu0 0.0
    %115 = vmatprep.subr.mxu0 0.0
    %116 = vmatpush1.msra.mxu0 0.0
    %117 = vmatprep.subr.mxu0 0.0
    %118 = vmatpush1.msra.mxu0 0.0
    %119 = vmatprep.subr.mxu0 0.0
    %120 = vmatpush1.msra.mxu0 0.0
    %121 = vmatprep.subr.mxu0 0.0
    %122 = vmatpush1.msra.mxu0 0.0
    %123 = vmatprep.subr.mxu0 0.0
    %124 = vmatpush1.msra.mxu0 0.0
    %125 = vmatprep.subr.mxu0 0.0
    %126 = vmatpush1.msra.mxu0 0.0
    %127 = vmatprep.subr.mxu0 0.0
    %128 = vmatpush1.msra.mxu0 0.0
    %129 = vmatprep.subr.mxu0 0.0
    %130 = vmatpush1.msra.mxu0 0.0
    %131 = vmatprep.subr.mxu0 0.0
    %132 = vmatpush1.msra.mxu0 0.0
    %133 = vmatprep.subr.mxu0 0.0
    %134 = vmatpush1.msra.mxu0 0.0
    %135 = vmatprep.subr.mxu0 0.0
    %136 = vmatpush1.msra.mxu0 0.0
    %137 = vmatprep.subr.mxu0 0.0
    %138 = vmatpush1.msra.mxu0 0.0
    %139 = vmatprep.subr.mxu0 0.0
    %140 = vmatpush1.msra.mxu0 0.0
    %141 = vmatprep.subr.mxu0 0.0
    %142 = vmatpush1.msra.mxu0 0.0
    %143 = vmatprep.mubr.f32.mxu0 0.0
    %144 = vmatmul.mubr.f32.gmra.mrb[0].mxu0 %v56
    %v145 = vpop.f32.mrb[0].mxu0
    %v146 = vadd.f32 0.0, %v145
    %v147 = vpop.f32.mrb[0].mxu0
    %148 = vmatprep.mubr.f32.mxu0 0.0
    %149 = vmatmul.mubr.f32.gmra.mrb[0].mxu0 %v59
    %v150 = vpop.f32.mrb[0].mxu0
    %v151 = vadd.f32 0.0, %v150
    %v152 = vpop.f32.mrb[0].mxu0
    %153 = vmatprep.mubr.f32.mxu0 0.0
    %154 = vmatmul.mubr.f32.gmra.mrb[0].mxu0 %v62
    %v155 = vpop.f32.mrb[0].mxu0
    %v156 = vadd.f32 0.0, %v155
    %v157 = vpop.f32.mrb[0].mxu0
    %158 = vmatprep.mubr.f32.mxu0 0.0
    %159 = vmatmul.mubr.f32.gmra.mrb[0].mxu0 %v65
    %v160 = vpop.f32.mrb[0].mxu0
    %v161 = vadd.f32 0.0, %v160
    %v162 = vpop.f32.mrb[0].mxu0
    %163 = vmatprep.mubr.f32.mxu0 0.0
    %164 = vmatmul.mubr.f32.gmra.mrb[0].mxu0 %v68
    %v165 = vpop.f32.mrb[0].mxu0
    %v166 = vadd.f32 0.0, %v165
    %v167 = vpop.f32.mrb[0].mxu0
    %168 = vmatprep.mubr.f32.mxu0 0.0
    %169 = vmatmul.mubr.f32.gmra.mrb[0].mxu0 %v71
    %v170 = vpop.f32.mrb[0].mxu0
    %v171 = vadd.f32 0.0, %v170
    %v172 = vpop.f32.mrb[0].mxu0
    %173 = vmatprep.mubr.f32.mxu0 0.0
    %174 = vmatmul.mubr.f32.gmra.mrb[0].mxu0 %v74
    %v175 = vpop.f32.mrb[0].mxu0
    %v176 = vadd.f32 0.0, %v175
    %v177 = vpop.f32.mrb[0].mxu0
    %178 = vmatprep.mubr.f32.mxu0 0.0
    %179 = vmatmul.mubr.f32.gmra.mrb[0].mxu0 %v77
    %v180 = vpop.f32.mrb[0].mxu0
    %v181 = vadd.f32 0.0, %v180
    %v182 = vpop.f32.mrb[0].mxu0
    %183 = vdwg.mxu0
    %v184 = vld [vmem:[%s3] sm:$0xff]
    %v185 = vld [vmem:[%s3 + $0x8] sm:$0xff]
    %v186 = vld [vmem:[%s3 + $0x10] sm:$0xff]
    %v187 = vld [vmem:[%s3 + $0x18] sm:$0xff]
    %vm188 = vcmask 261120
    %v190 = vsel %vm188, %v146, 0
    %v193 = vsel %vm188, %v151, 0
    %v196 = vsel %vm188, %v156, 0
    %v199 = vsel %vm188, %v161, 0
    %v202 = vsel %vm188, %v166, 0
    %v205 = vsel %vm188, %v171, 0
    %v208 = vsel %vm188, %v176, 0
    %v211 = vsel %vm188, %v181, 0
    %213 = vmatprep.subr.mxu0 0.0
    %214 = vmatpush1.msra.mxu0 %v184
    %215 = vmatprep.subr.mxu0 0.0
    %216 = vmatpush1.msra.mxu0 %v185
    %217 = vmatprep.subr.mxu0 0.0
    %218 = vmatpush1.msra.mxu0 %v186
    %219 = vmatprep.subr.mxu0 0.0
    %220 = vmatpush1.msra.mxu0 %v187
    %221 = vmatprep.subr.mxu0 0.0
    %222 = vmatpush1.msra.mxu0 0.0
    %223 = vmatprep.subr.mxu0 0.0
    %224 = vmatpush1.msra.mxu0 0.0
    %225 = vmatprep.subr.mxu0 0.0
    %226 = vmatpush1.msra.mxu0 0.0
    %227 = vmatprep.subr.mxu0 0.0
    %228 = vmatpush1.msra.mxu0 0.0
    %229 = vmatprep.subr.mxu0 0.0
    %230 = vmatpush1.msra.mxu0 0.0
    %231 = vmatprep.subr.mxu0 0.0
    %232 = vmatpush1.msra.mxu0 0.0
    %233 = vmatprep.subr.mxu0 0.0
    %234 = vmatpush1.msra.mxu0 0.0
    %235 = vmatprep.subr.mxu0 0.0
    %236 = vmatpush1.msra.mxu0 0.0
    %237 = vmatprep.subr.mxu0 0.0
    %238 = vmatpush1.msra.mxu0 0.0
    %239 = vmatprep.subr.mxu0 0.0
    %240 = vmatpush1.msra.mxu0 0.0
    %241 = vmatprep.subr.mxu0 0.0
    %242 = vmatpush1.msra.mxu0 0.0
    %243 = vmatprep.subr.mxu0 0.0
    %244 = vmatpush1.msra.mxu0 0.0
    %245 = vmatprep.subr.mxu0 0.0
    %246 = vmatpush1.msra.mxu0 0.0
    %247 = vmatprep.subr.mxu0 0.0
    %248 = vmatpush1.msra.mxu0 0.0
    %249 = vmatprep.subr.mxu0 0.0
    %250 = vmatpush1.msra.mxu0 0.0
    %251 = vmatprep.subr.mxu0 0.0
    %252 = vmatpush1.msra.mxu0 0.0
    %253 = vmatprep.subr.mxu0 0.0
    %254 = vmatpush1.msra.mxu0 0.0
    %255 = vmatprep.subr.mxu0 0.0
    %256 = vmatpush1.msra.mxu0 0.0
    %257 = vmatprep.subr.mxu0 0.0
    %258 = vmatpush1.msra.mxu0 0.0
    %259 = vmatprep.subr.mxu0 0.0
    %260 = vmatpush1.msra.mxu0 0.0
    %261 = vmatprep.subr.mxu0 0.0
    %262 = vmatpush1.msra.mxu0 0.0
    %263 = vmatprep.subr.mxu0 0.0
    %264 = vmatpush1.msra.mxu0 0.0
    %265 = vmatprep.subr.mxu0 0.0
    %266 = vmatpush1.msra.mxu0 0.0
    %267 = vmatprep.subr.mxu0 0.0
    %268 = vmatpush1.msra.mxu0 0.0
    %269 = vmatprep.subr.mxu0 0.0
    %270 = vmatpush1.msra.mxu0 0.0
    %271 = vmatprep.subr.mxu0 0.0
    %272 = vmatpush1.msra.mxu0 0.0
    %273 = vmatprep.subr.mxu0 0.0
    %274 = vmatpush1.msra.mxu0 0.0
    %275 = vmatprep.subr.mxu0 0.0
    %276 = vmatpush1.msra.mxu0 0.0
    %277 = vmatprep.mubr.f32.mxu0 0.0
    %278 = vmatmul.mubr.f32.gmra.mrb[0].mxu0 %v190
    %v279 = vpop.f32.mrb[0].mxu0
    %v280 = vadd.f32 0.0, %v279
    %v281 = vpop.f32.mrb[0].mxu0
    %282 = vmatprep.mubr.f32.mxu0 0.0
    %283 = vmatmul.mubr.f32.gmra.mrb[0].mxu0 %v193
    %v284 = vpop.f32.mrb[0].mxu0
    %v285 = vadd.f32 0.0, %v284
    %v286 = vpop.f32.mrb[0].mxu0
    %287 = vmatprep.mubr.f32.mxu0 0.0
    %288 = vmatmul.mubr.f32.gmra.mrb[0].mxu0 %v196
    %v289 = vpop.f32.mrb[0].mxu0
    %v290 = vadd.f32 0.0, %v289
    %v291 = vpop.f32.mrb[0].mxu0
    %292 = vmatprep.mubr.f32.mxu0 0.0
    %293 = vmatmul.mubr.f32.gmra.mrb[0].mxu0 %v199
    %v294 = vpop.f32.mrb[0].mxu0
    %v295 = vadd.f32 0.0, %v294
    %v296 = vpop.f32.mrb[0].mxu0
    %297 = vmatprep.mubr.f32.mxu0 0.0
    %298 = vmatmul.mubr.f32.gmra.mrb[0].mxu0 %v202
    %v299 = vpop.f32.mrb[0].mxu0
    %v300 = vadd.f32 0.0, %v299
    %v301 = vpop.f32.mrb[0].mxu0
    %302 = vmatprep.mubr.f32.mxu0 0.0
    %303 = vmatmul.mubr.f32.gmra.mrb[0].mxu0 %v205
    %v304 = vpop.f32.mrb[0].mxu0
    %v305 = vadd.f32 0.0, %v304
    %v306 = vpop.f32.mrb[0].mxu0
    %307 = vmatprep.mubr.f32.mxu0 0.0
    %308 = vmatmul.mubr.f32.gmra.mrb[0].mxu0 %v208
    %v309 = vpop.f32.mrb[0].mxu0
    %v310 = vadd.f32 0.0, %v309
    %v311 = vpop.f32.mrb[0].mxu0
    %312 = vmatprep.mubr.f32.mxu0 0.0
    %313 = vmatmul.mubr.f32.gmra.mrb[0].mxu0 %v211
    %v314 = vpop.f32.mrb[0].mxu0
    %v315 = vadd.f32 0.0, %v314
    %v316 = vpop.f32.mrb[0].mxu0
    %317 = vdwg.mxu0
    %v318 = vld [vmem:[%s4] sm:$0xf]
    %v320 = vsel %vm188, %v318, 0
    %322 = vmatprep.subr.mxu0 0.0
    %323 = vmatpush1.xpose.msra.mxu0 %v190
    %324 = vmatprep.subr.mxu0 0.0
    %325 = vmatpush1.xpose.msra.mxu0 %v193
    %326 = vmatprep.subr.mxu0 0.0
    %327 = vmatpush1.xpose.msra.mxu0 %v196
    %328 = vmatprep.subr.mxu0 0.0
    %329 = vmatpush1.xpose.msra.mxu0 %v199
    %330 = vmatprep.subr.mxu0 0.0
    %331 = vmatpush1.xpose.msra.mxu0 %v202
    %332 = vmatprep.subr.mxu0 0.0
    %333 = vmatpush1.xpose.msra.mxu0 %v205
    %334 = vmatprep.subr.mxu0 0.0
    %335 = vmatpush1.xpose.msra.mxu0 %v208
    %336 = vmatprep.subr.mxu0 0.0
    %337 = vmatpush1.xpose.msra.mxu0 %v211
    %338 = vmatprep.subr.mxu0 0.0
    %339 = vmatpush1.xpose.msra.mxu0 0.0
    %340 = vmatprep.subr.mxu0 0.0
    %341 = vmatpush1.xpose.msra.mxu0 0.0
    %342 = vmatprep.subr.mxu0 0.0
    %343 = vmatpush1.xpose.msra.mxu0 0.0
    %344 = vmatprep.subr.mxu0 0.0
    %345 = vmatpush1.xpose.msra.mxu0 0.0
    %346 = vmatprep.subr.mxu0 0.0
    %347 = vmatpush1.xpose.msra.mxu0 0.0
    %348 = vmatprep.subr.mxu0 0.0
    %349 = vmatpush1.xpose.msra.mxu0 0.0
    %350 = vmatprep.subr.mxu0 0.0
    %351 = vmatpush1.xpose.msra.mxu0 0.0
    %352 = vmatprep.subr.mxu0 0.0
    %353 = vmatpush1.xpose.msra.mxu0 0.0
    %354 = vmatprep.subr.mxu0 0.0
    %355 = vmatpush1.xpose.msra.mxu0 0.0
    %356 = vmatprep.subr.mxu0 0.0
    %357 = vmatpush1.xpose.msra.mxu0 0.0
    %358 = vmatprep.subr.mxu0 0.0
    %359 = vmatpush1.xpose.msra.mxu0 0.0
    %360 = vmatprep.subr.mxu0 0.0
    %361 = vmatpush1.xpose.msra.mxu0 0.0
    %362 = vmatprep.subr.mxu0 0.0
    %363 = vmatpush1.xpose.msra.mxu0 0.0
    %364 = vmatprep.subr.mxu0 0.0
    %365 = vmatpush1.xpose.msra.mxu0 0.0
    %366 = vmatprep.subr.mxu0 0.0
    %367 = vmatpush1.xpose.msra.mxu0 0.0
    %368 = vmatprep.subr.mxu0 0.0
    %369 = vmatpush1.xpose.msra.mxu0 0.0
    %370 = vmatprep.subr.mxu0 0.0
    %371 = vmatpush1.xpose.msra.mxu0 0.0
    %372 = vmatprep.subr.mxu0 0.0
    %373 = vmatpush1.xpose.msra.mxu0 0.0
    %374 = vmatprep.subr.mxu0 0.0
    %375 = vmatpush1.xpose.msra.mxu0 0.0
    %376 = vmatprep.subr.mxu0 0.0
    %377 = vmatpush1.xpose.msra.mxu0 0.0
    %378 = vmatprep.subr.mxu0 0.0
    %379 = vmatpush1.xpose.msra.mxu0 0.0
    %380 = vmatprep.subr.mxu0 0.0
    %381 = vmatpush1.xpose.msra.mxu0 0.0
    %382 = vmatprep.subr.mxu0 0.0
    %383 = vmatpush1.xpose.msra.mxu0 0.0
    %384 = vmatprep.subr.mxu0 0.0
    %385 = vmatpush1.xpose.msra.mxu0 0.0
    %386 = vmatprep.mubr.f32.mxu0 0.0
    %387 = vmatmul.mubr.f32.gmra.mrb[0].mxu0 %v320
    %v388 = vpop.f32.mrb[0].mxu0
    %v389 = vadd.f32 0.0, %v388
    %v390 = vpop.f32.mrb[0].mxu0
    %391 = vdwg.mxu0
    %393 = vset.pattern.permute.xlu0 0
    %394 = vperm.xlu0 %393, %v280
    %v395 = vpop.permute.xlu0 %394
    %398 = vset.pattern.permute.xlu0 0
    %399 = vperm.xlu0 %398, %v285
    %v400 = vpop.permute.xlu0 %399
    %403 = vset.pattern.permute.xlu0 0
    %404 = vperm.xlu0 %403, %v290
    %v405 = vpop.permute.xlu0 %404
    %408 = vset.pattern.permute.xlu0 0
    %409 = vperm.xlu0 %408, %v295
    %v410 = vpop.permute.xlu0 %409
    %413 = vset.pattern.permute.xlu0 0
    %414 = vperm.xlu0 %413, %v300
    %v415 = vpop.permute.xlu0 %414
    %418 = vset.pattern.permute.xlu0 0
    %419 = vperm.xlu0 %418, %v305
    %v420 = vpop.permute.xlu0 %419
    %423 = vset.pattern.permute.xlu0 0
    %424 = vperm.xlu0 %423, %v310
    %v425 = vpop.permute.xlu0 %424
    %428 = vset.pattern.permute.xlu0 0
    %429 = vperm.xlu0 %428, %v315
    %v430 = vpop.permute.xlu0 %429
    %v432 = vlaneseq
    %v433 = vshrl.u32 %v432, 7
    %v434 = vsub.s32 0, %v433
    %v435 = vrot.slane %v389, %v434
    %v436 = vadd.f32 %v395, %v435
    %v437 = vadd.f32 %v400, %v435
    %v438 = vadd.f32 %v405, %v435
    %v439 = vadd.f32 %v410, %v435
    %v440 = vadd.f32 %v415, %v435
    %v441 = vadd.f32 %v420, %v435
    %v442 = vadd.f32 %v425, %v435
    %v443 = vadd.f32 %v430, %v435
    %vm444 = vcmp.ge.f32.partialorder %v436, 0.0
    %vm445 = vcmp.ge.f32.partialorder %v437, 0.0
    %vm446 = vcmp.ge.f32.partialorder %v438, 0.0
    %vm447 = vcmp.ge.f32.partialorder %v439, 0.0
    %vm448 = vcmp.ge.f32.partialorder %v440, 0.0
    %vm449 = vcmp.ge.f32.partialorder %v441, 0.0
    %vm450 = vcmp.ge.f32.partialorder %v442, 0.0
    %vm451 = vcmp.ge.f32.partialorder %v443, 0.0
    %v452 = vmul.f32 %v436, 0.2
    %v453 = vmul.f32 %v437, 0.2
    %v454 = vmul.f32 %v438, 0.2
    %v455 = vmul.f32 %v439, 0.2
    %v456 = vmul.f32 %v440, 0.2
    %v457 = vmul.f32 %v441, 0.2
    %v458 = vmul.f32 %v442, 0.2
    %v459 = vmul.f32 %v443, 0.2
    %v460 = vsel %vm444, %v436, %v452
    %v461 = vsel %vm445, %v437, %v453
    %v462 = vsel %vm446, %v438, %v454
    %v463 = vsel %vm447, %v439, %v455
    %v464 = vsel %vm448, %v440, %v456
    %v465 = vsel %vm449, %v441, %v457
    %v466 = vsel %vm450, %v442, %v458
    %v467 = vsel %vm451, %v443, %v459
    %v468 = vsub.f32 0.0, %v460
    %v469 = vsub.f32 0.0, %v461
    %v470 = vsub.f32 0.0, %v462
    %v471 = vsub.f32 0.0, %v463
    %v472 = vsub.f32 0.0, %v464
    %v473 = vsub.f32 0.0, %v465
    %v474 = vsub.f32 0.0, %v466
    %v475 = vsub.f32 0.0, %v467
    %v476 = vsel %vm44, %v468, -1e+30
    %v477 = vsel %vm45, %v469, -1e+30
    %v478 = vsel %vm46, %v470, -1e+30
    %v479 = vsel %vm47, %v471, -1e+30
    %v480 = vsel %vm48, %v472, -1e+30
    %v481 = vsel %vm49, %v473, -1e+30
    %v482 = vsel %vm50, %v474, -1e+30
    %v483 = vsel %vm51, %v475, -1e+30
    %v484 = vmul.f32 %v476, 1.442695
    %v485 = vpow.pop %v484
    %v486 = vmul.f32 %v477, 1.442695
    %v487 = vpow.pop %v486
    %v488 = vmul.f32 %v478, 1.442695
    %v489 = vpow.pop %v488
    %v490 = vmul.f32 %v479, 1.442695
    %v491 = vpow.pop %v490
    %v492 = vmul.f32 %v480, 1.442695
    %v493 = vpow.pop %v492
    %v494 = vmul.f32 %v481, 1.442695
    %v495 = vpow.pop %v494
    %v496 = vmul.f32 %v482, 1.442695
    %v497 = vpow.pop %v496
    %v498 = vmul.f32 %v483, 1.442695
    %v499 = vpow.pop %v498
    %vm500 = vcmask 523264
    %v501 = vsel %vm500, %v485, 0.0
    %502 = vadd.xlane.f32.xlu0 %v501
    %v503 = vpop.xlane.xlu0 %502
    %v504 = vsel %vm500, %v487, 0.0
    %505 = vadd.xlane.f32.xlu0 %v504
    %v506 = vpop.xlane.xlu0 %505
    %v507 = vsel %vm500, %v489, 0.0
    %508 = vadd.xlane.f32.xlu0 %v507
    %v509 = vpop.xlane.xlu0 %508
    %v510 = vsel %vm500, %v491, 0.0
    %511 = vadd.xlane.f32.xlu0 %v510
    %v512 = vpop.xlane.xlu0 %511
    %v513 = vsel %vm500, %v493, 0.0
    %514 = vadd.xlane.f32.xlu0 %v513
    %v515 = vpop.xlane.xlu0 %514
    %v516 = vsel %vm500, %v495, 0.0
    %517 = vadd.xlane.f32.xlu0 %v516
    %v518 = vpop.xlane.xlu0 %517
    %v519 = vsel %vm500, %v497, 0.0
    %520 = vadd.xlane.f32.xlu0 %v519
    %v521 = vpop.xlane.xlu0 %520
    %v522 = vsel %vm500, %v499, 0.0
    %523 = vadd.xlane.f32.xlu0 %v522
    %v524 = vpop.xlane.xlu0 %523
    %v525 = vpack.c.bf16 %v487, %v485
    %v526 = vpack.c.bf16 %v491, %v489
    %v527 = vpack.c.bf16 %v495, %v493
    %v528 = vpack.c.bf16 %v499, %v497
    %v529 = vpack.c.bf16 %v151, %v146
    %v530 = vpack.c.bf16 %v161, %v156
    %v531 = vpack.c.bf16 %v171, %v166
    %v532 = vpack.c.bf16 %v181, %v176
    %v534 = vsel %vm500, %v525, 0
    %v537 = vsel %vm500, %v526, 0
    %v540 = vsel %vm500, %v527, 0
    %v543 = vsel %vm500, %v528, 0
    %545 = vmatprep.subr.bf16.mxu0 0
    %546 = vmatpush1.bf16.msra.mxu0 %v529
    %547 = vmatprep.subr.bf16.mxu0 0
    %548 = vmatpush1.bf16.msra.mxu0 %v530
    %549 = vmatprep.subr.bf16.mxu0 0
    %550 = vmatpush1.bf16.msra.mxu0 %v531
    %551 = vmatprep.subr.bf16.mxu0 0
    %552 = vmatpush1.bf16.msra.mxu0 %v532
    %553 = vmatprep.subr.bf16.mxu0 0
    %554 = vmatpush1.bf16.msra.mxu0 0
    %555 = vmatprep.subr.bf16.mxu0 0
    %556 = vmatpush1.bf16.msra.mxu0 0
    %557 = vmatprep.subr.bf16.mxu0 0
    %558 = vmatpush1.bf16.msra.mxu0 0
    %559 = vmatprep.subr.bf16.mxu0 0
    %560 = vmatpush1.bf16.msra.mxu0 0
    %561 = vmatprep.subr.bf16.mxu0 0
    %562 = vmatpush1.bf16.msra.mxu0 0
    %563 = vmatprep.subr.bf16.mxu0 0
    %564 = vmatpush1.bf16.msra.mxu0 0
    %565 = vmatprep.subr.bf16.mxu0 0
    %566 = vmatpush1.bf16.msra.mxu0 0
    %567 = vmatprep.subr.bf16.mxu0 0
    %568 = vmatpush1.bf16.msra.mxu0 0
    %569 = vmatprep.subr.bf16.mxu0 0
    %570 = vmatpush1.bf16.msra.mxu0 0
    %571 = vmatprep.subr.bf16.mxu0 0
    %572 = vmatpush1.bf16.msra.mxu0 0
    %573 = vmatprep.subr.bf16.mxu0 0
    %574 = vmatpush1.bf16.msra.mxu0 0
    %575 = vmatprep.subr.bf16.mxu0 0
    %576 = vmatpush1.bf16.msra.mxu0 0
    %577 = vmatprep.mubr.bf16.mxu0 0
    %578 = vmatmul.mubr.bf16.gmra.mrb[0].mxu0 %v534
    %v579 = vpop.f32.mrb[0].mxu0
    %v580 = vadd.f32 0.0, %v579
    %v581 = vpop.f32.mrb[0].mxu0
    %v582 = vpop.f32.mrb[0].mxu0
    %v583 = vadd.f32 0.0, %v582
    %v584 = vpop.f32.mrb[0].mxu0
    %585 = vmatprep.mubr.bf16.mxu0 0
    %586 = vmatmul.mubr.bf16.gmra.mrb[0].mxu0 %v537
    %v587 = vpop.f32.mrb[0].mxu0
    %v588 = vadd.f32 0.0, %v587
    %v589 = vpop.f32.mrb[0].mxu0
    %v590 = vpop.f32.mrb[0].mxu0
    %v591 = vadd.f32 0.0, %v590
    %v592 = vpop.f32.mrb[0].mxu0
    %593 = vmatprep.mubr.bf16.mxu0 0
    %594 = vmatmul.mubr.bf16.gmra.mrb[0].mxu0 %v540
    %v595 = vpop.f32.mrb[0].mxu0
    %v596 = vadd.f32 0.0, %v595
    %v597 = vpop.f32.mrb[0].mxu0
    %v598 = vpop.f32.mrb[0].mxu0
    %v599 = vadd.f32 0.0, %v598
    %v600 = vpop.f32.mrb[0].mxu0
    %601 = vmatprep.mubr.bf16.mxu0 0
    %602 = vmatmul.mubr.bf16.gmra.mrb[0].mxu0 %v543
    %v603 = vpop.f32.mrb[0].mxu0
    %v604 = vadd.f32 0.0, %v603
    %v605 = vpop.f32.mrb[0].mxu0
    %v606 = vpop.f32.mrb[0].mxu0
    %v607 = vadd.f32 0.0, %v606
    %v608 = vpop.f32.mrb[0].mxu0
    %609 = vdwg.mxu0
    %v610 = vrcp.pop %v503
    %v611 = vrcp.pop %v506
    %v612 = vrcp.pop %v509
    %v613 = vrcp.pop %v512
    %v614 = vrcp.pop %v515
    %v615 = vrcp.pop %v518
    %v616 = vrcp.pop %v521
    %v617 = vrcp.pop %v524
    %v618 = vmul.f32 %v580, %v610
    %v619 = vmul.f32 %v583, %v611
    %v620 = vmul.f32 %v588, %v612
    %v621 = vmul.f32 %v591, %v613
    %v622 = vmul.f32 %v596, %v614
    %v623 = vmul.f32 %v599, %v615
    %v624 = vmul.f32 %v604, %v616
    %v625 = vmul.f32 %v607, %v617
    %vm626 = vcmp.gt.f32.partialorder %v618, 0.0
    %vm627 = vcmp.gt.f32.partialorder %v619, 0.0
    %vm628 = vcmp.gt.f32.partialorder %v620, 0.0
    %vm629 = vcmp.gt.f32.partialorder %v621, 0.0
    %vm630 = vcmp.gt.f32.partialorder %v622, 0.0
    %vm631 = vcmp.gt.f32.partialorder %v623, 0.0
    %vm632 = vcmp.gt.f32.partialorder %v624, 0.0
    %vm633 = vcmp.gt.f32.partialorder %v625, 0.0
    %v634 = vmul.f32 %v618, 1.442695
    %v635 = vpow.pop %v634
    %v636 = vmul.f32 %v619, 1.442695
    %v637 = vpow.pop %v636
    %v638 = vmul.f32 %v620, 1.442695
    %v639 = vpow.pop %v638
    %v640 = vmul.f32 %v621, 1.442695
    %v641 = vpow.pop %v640
    %v642 = vmul.f32 %v622, 1.442695
    %v643 = vpow.pop %v642
    %v644 = vmul.f32 %v623, 1.442695
    %v645 = vpow.pop %v644
    %v646 = vmul.f32 %v624, 1.442695
    %v647 = vpow.pop %v646
    %v648 = vmul.f32 %v625, 1.442695
    %v649 = vpow.pop %v648
    %v650 = vsub.f32 %v635, 1.0
    %v651 = vsub.f32 %v637, 1.0
    %v652 = vsub.f32 %v639, 1.0
    %v653 = vsub.f32 %v641, 1.0
    %v654 = vsub.f32 %v643, 1.0
    %v655 = vsub.f32 %v645, 1.0
    %v656 = vsub.f32 %v647, 1.0
    %v657 = vsub.f32 %v649, 1.0
    %v658 = vsel %vm626, %v618, %v650
    %v659 = vsel %vm627, %v619, %v651
    %v660 = vsel %vm628, %v620, %v652
    %v661 = vsel %vm629, %v621, %v653
    %v662 = vsel %vm630, %v622, %v654
    %v663 = vsel %vm631, %v623, %v655
    %v664 = vsel %vm632, %v624, %v656
    %v665 = vsel %vm633, %v625, %v657
    %666 = vset.pattern.permute.xlu0 1
    %667 = vperm.xlu0 %666, %v280
    %v668 = vpop.permute.xlu0 %667
    %670 = vset.pattern.permute.xlu0 1
    %671 = vperm.xlu0 %670, %v285
    %v672 = vpop.permute.xlu0 %671
    %674 = vset.pattern.permute.xlu0 1
    %675 = vperm.xlu0 %674, %v290
    %v676 = vpop.permute.xlu0 %675
    %678 = vset.pattern.permute.xlu0 1
    %679 = vperm.xlu0 %678, %v295
    %v680 = vpop.permute.xlu0 %679
    %682 = vset.pattern.permute.xlu0 1
    %683 = vperm.xlu0 %682, %v300
    %v684 = vpop.permute.xlu0 %683
    %686 = vset.pattern.permute.xlu0 1
    %687 = vperm.xlu0 %686, %v305
    %v688 = vpop.permute.xlu0 %687
    %690 = vset.pattern.permute.xlu0 1
    %691 = vperm.xlu0 %690, %v310
    %v692 = vpop.permute.xlu0 %691
    %694 = vset.pattern.permute.xlu0 1
    %695 = vperm.xlu0 %694, %v315
    %v696 = vpop.permute.xlu0 %695
    %v698 = vlaneseq
    %v699 = vshrl.u32 %v698, 7
    %v700 = vsub.s32 1, %v699
    %v701 = vrot.slane %v389, %v700
    %v702 = vadd.f32 %v668, %v701
    %v703 = vadd.f32 %v672, %v701
    %v704 = vadd.f32 %v676, %v701
    %v705 = vadd.f32 %v680, %v701
    %v706 = vadd.f32 %v684, %v701
    %v707 = vadd.f32 %v688, %v701
    %v708 = vadd.f32 %v692, %v701
    %v709 = vadd.f32 %v696, %v701
    %vm710 = vcmp.ge.f32.partialorder %v702, 0.0
    %vm711 = vcmp.ge.f32.partialorder %v703, 0.0
    %vm712 = vcmp.ge.f32.partialorder %v704, 0.0
    %vm713 = vcmp.ge.f32.partialorder %v705, 0.0
    %vm714 = vcmp.ge.f32.partialorder %v706, 0.0
    %vm715 = vcmp.ge.f32.partialorder %v707, 0.0
    %vm716 = vcmp.ge.f32.partialorder %v708, 0.0
    %vm717 = vcmp.ge.f32.partialorder %v709, 0.0
    %v718 = vmul.f32 %v702, 0.2
    %v719 = vmul.f32 %v703, 0.2
    %v720 = vmul.f32 %v704, 0.2
    %v721 = vmul.f32 %v705, 0.2
    %v722 = vmul.f32 %v706, 0.2
    %v723 = vmul.f32 %v707, 0.2
    %v724 = vmul.f32 %v708, 0.2
    %v725 = vmul.f32 %v709, 0.2
    %v726 = vsel %vm710, %v702, %v718
    %v727 = vsel %vm711, %v703, %v719
    %v728 = vsel %vm712, %v704, %v720
    %v729 = vsel %vm713, %v705, %v721
    %v730 = vsel %vm714, %v706, %v722
    %v731 = vsel %vm715, %v707, %v723
    %v732 = vsel %vm716, %v708, %v724
    %v733 = vsel %vm717, %v709, %v725
    %v734 = vsub.f32 0.0, %v726
    %v735 = vsub.f32 0.0, %v727
    %v736 = vsub.f32 0.0, %v728
    %v737 = vsub.f32 0.0, %v729
    %v738 = vsub.f32 0.0, %v730
    %v739 = vsub.f32 0.0, %v731
    %v740 = vsub.f32 0.0, %v732
    %v741 = vsub.f32 0.0, %v733
    %v742 = vsel %vm44, %v734, -1e+30
    %v743 = vsel %vm45, %v735, -1e+30
    %v744 = vsel %vm46, %v736, -1e+30
    %v745 = vsel %vm47, %v737, -1e+30
    %v746 = vsel %vm48, %v738, -1e+30
    %v747 = vsel %vm49, %v739, -1e+30
    %v748 = vsel %vm50, %v740, -1e+30
    %v749 = vsel %vm51, %v741, -1e+30
    %v750 = vmul.f32 %v742, 1.442695
    %v751 = vpow.pop %v750
    %v752 = vmul.f32 %v743, 1.442695
    %v753 = vpow.pop %v752
    %v754 = vmul.f32 %v744, 1.442695
    %v755 = vpow.pop %v754
    %v756 = vmul.f32 %v745, 1.442695
    %v757 = vpow.pop %v756
    %v758 = vmul.f32 %v746, 1.442695
    %v759 = vpow.pop %v758
    %v760 = vmul.f32 %v747, 1.442695
    %v761 = vpow.pop %v760
    %v762 = vmul.f32 %v748, 1.442695
    %v763 = vpow.pop %v762
    %v764 = vmul.f32 %v749, 1.442695
    %v765 = vpow.pop %v764
    %v766 = vsel %vm500, %v751, 0.0
    %767 = vadd.xlane.f32.xlu0 %v766
    %v768 = vpop.xlane.xlu0 %767
    %v769 = vsel %vm500, %v753, 0.0
    %770 = vadd.xlane.f32.xlu0 %v769
    %v771 = vpop.xlane.xlu0 %770
    %v772 = vsel %vm500, %v755, 0.0
    %773 = vadd.xlane.f32.xlu0 %v772
    %v774 = vpop.xlane.xlu0 %773
    %v775 = vsel %vm500, %v757, 0.0
    %776 = vadd.xlane.f32.xlu0 %v775
    %v777 = vpop.xlane.xlu0 %776
    %v778 = vsel %vm500, %v759, 0.0
    %779 = vadd.xlane.f32.xlu0 %v778
    %v780 = vpop.xlane.xlu0 %779
    %v781 = vsel %vm500, %v761, 0.0
    %782 = vadd.xlane.f32.xlu0 %v781
    %v783 = vpop.xlane.xlu0 %782
    %v784 = vsel %vm500, %v763, 0.0
    %785 = vadd.xlane.f32.xlu0 %v784
    %v786 = vpop.xlane.xlu0 %785
    %v787 = vsel %vm500, %v765, 0.0
    %788 = vadd.xlane.f32.xlu0 %v787
    %v789 = vpop.xlane.xlu0 %788
    %v790 = vpack.c.bf16 %v753, %v751
    %v791 = vpack.c.bf16 %v757, %v755
    %v792 = vpack.c.bf16 %v761, %v759
    %v793 = vpack.c.bf16 %v765, %v763
    %798 = vrot.lane.b32.xlu0 %v529, 120
    %v799 = vpop.permute.xlu0 %798
    %800 = vrot.lane.b32.xlu0 %v530, 120
    %v801 = vpop.permute.xlu0 %800
    %802 = vrot.lane.b32.xlu0 %v531, 120
    %v803 = vpop.permute.xlu0 %802
    %804 = vrot.lane.b32.xlu0 %v532, 120
    %v805 = vpop.permute.xlu0 %804
    %v811 = vsel %vm500, %v790, 0
    %v814 = vsel %vm500, %v791, 0
    %v817 = vsel %vm500, %v792, 0
    %v820 = vsel %vm500, %v793, 0
    %822 = vmatprep.subr.bf16.mxu0 0
    %823 = vmatpush1.bf16.msra.mxu0 %v799
    %824 = vmatprep.subr.bf16.mxu0 0
    %825 = vmatpush1.bf16.msra.mxu0 %v801
    %826 = vmatprep.subr.bf16.mxu0 0
    %827 = vmatpush1.bf16.msra.mxu0 %v803
    %828 = vmatprep.subr.bf16.mxu0 0
    %829 = vmatpush1.bf16.msra.mxu0 %v805
    %830 = vmatprep.subr.bf16.mxu0 0
    %831 = vmatpush1.bf16.msra.mxu0 0
    %832 = vmatprep.subr.bf16.mxu0 0
    %833 = vmatpush1.bf16.msra.mxu0 0
    %834 = vmatprep.subr.bf16.mxu0 0
    %835 = vmatpush1.bf16.msra.mxu0 0
    %836 = vmatprep.subr.bf16.mxu0 0
    %837 = vmatpush1.bf16.msra.mxu0 0
    %838 = vmatprep.subr.bf16.mxu0 0
    %839 = vmatpush1.bf16.msra.mxu0 0
    %840 = vmatprep.subr.bf16.mxu0 0
    %841 = vmatpush1.bf16.msra.mxu0 0
    %842 = vmatprep.subr.bf16.mxu0 0
    %843 = vmatpush1.bf16.msra.mxu0 0
    %844 = vmatprep.subr.bf16.mxu0 0
    %845 = vmatpush1.bf16.msra.mxu0 0
    %846 = vmatprep.subr.bf16.mxu0 0
    %847 = vmatpush1.bf16.msra.mxu0 0
    %848 = vmatprep.subr.bf16.mxu0 0
    %849 = vmatpush1.bf16.msra.mxu0 0
    %850 = vmatprep.subr.bf16.mxu0 0
    %851 = vmatpush1.bf16.msra.mxu0 0
    %852 = vmatprep.subr.bf16.mxu0 0
    %853 = vmatpush1.bf16.msra.mxu0 0
    %854 = vmatprep.mubr.bf16.mxu0 0
    %855 = vmatmul.mubr.bf16.gmra.mrb[0].mxu0 %v811
    %v856 = vpop.f32.mrb[0].mxu0
    %v857 = vadd.f32 0.0, %v856
    %v858 = vpop.f32.mrb[0].mxu0
    %v859 = vpop.f32.mrb[0].mxu0
    %v860 = vadd.f32 0.0, %v859
    %v861 = vpop.f32.mrb[0].mxu0
    %862 = vmatprep.mubr.bf16.mxu0 0
    %863 = vmatmul.mubr.bf16.gmra.mrb[0].mxu0 %v814
    %v864 = vpop.f32.mrb[0].mxu0
    %v865 = vadd.f32 0.0, %v864
    %v866 = vpop.f32.mrb[0].mxu0
    %v867 = vpop.f32.mrb[0].mxu0
    %v868 = vadd.f32 0.0, %v867
    %v869 = vpop.f32.mrb[0].mxu0
    %870 = vmatprep.mubr.bf16.mxu0 0
    %871 = vmatmul.mubr.bf16.gmra.mrb[0].mxu0 %v817
    %v872 = vpop.f32.mrb[0].mxu0
    %v873 = vadd.f32 0.0, %v872
    %v874 = vpop.f32.mrb[0].mxu0
    %v875 = vpop.f32.mrb[0].mxu0
    %v876 = vadd.f32 0.0, %v875
    %v877 = vpop.f32.mrb[0].mxu0
    %878 = vmatprep.mubr.bf16.mxu0 0
    %879 = vmatmul.mubr.bf16.gmra.mrb[0].mxu0 %v820
    %v880 = vpop.f32.mrb[0].mxu0
    %v881 = vadd.f32 0.0, %v880
    %v882 = vpop.f32.mrb[0].mxu0
    %v883 = vpop.f32.mrb[0].mxu0
    %v884 = vadd.f32 0.0, %v883
    %v885 = vpop.f32.mrb[0].mxu0
    %886 = vdwg.mxu0
    %v887 = vrcp.pop %v768
    %v888 = vrcp.pop %v771
    %v889 = vrcp.pop %v774
    %v890 = vrcp.pop %v777
    %v891 = vrcp.pop %v780
    %v892 = vrcp.pop %v783
    %v893 = vrcp.pop %v786
    %v894 = vrcp.pop %v789
    %v895 = vmul.f32 %v857, %v887
    %v896 = vmul.f32 %v860, %v888
    %v897 = vmul.f32 %v865, %v889
    %v898 = vmul.f32 %v868, %v890
    %v899 = vmul.f32 %v873, %v891
    %v900 = vmul.f32 %v876, %v892
    %v901 = vmul.f32 %v881, %v893
    %v902 = vmul.f32 %v884, %v894
    %vm903 = vcmp.gt.f32.partialorder %v895, 0.0
    %vm904 = vcmp.gt.f32.partialorder %v896, 0.0
    %vm905 = vcmp.gt.f32.partialorder %v897, 0.0
    %vm906 = vcmp.gt.f32.partialorder %v898, 0.0
    %vm907 = vcmp.gt.f32.partialorder %v899, 0.0
    %vm908 = vcmp.gt.f32.partialorder %v900, 0.0
    %vm909 = vcmp.gt.f32.partialorder %v901, 0.0
    %vm910 = vcmp.gt.f32.partialorder %v902, 0.0
    %v911 = vmul.f32 %v895, 1.442695
    %v912 = vpow.pop %v911
    %v913 = vmul.f32 %v896, 1.442695
    %v914 = vpow.pop %v913
    %v915 = vmul.f32 %v897, 1.442695
    %v916 = vpow.pop %v915
    %v917 = vmul.f32 %v898, 1.442695
    %v918 = vpow.pop %v917
    %v919 = vmul.f32 %v899, 1.442695
    %v920 = vpow.pop %v919
    %v921 = vmul.f32 %v900, 1.442695
    %v922 = vpow.pop %v921
    %v923 = vmul.f32 %v901, 1.442695
    %v924 = vpow.pop %v923
    %v925 = vmul.f32 %v902, 1.442695
    %v926 = vpow.pop %v925
    %v927 = vsub.f32 %v912, 1.0
    %v928 = vsub.f32 %v914, 1.0
    %v929 = vsub.f32 %v916, 1.0
    %v930 = vsub.f32 %v918, 1.0
    %v931 = vsub.f32 %v920, 1.0
    %v932 = vsub.f32 %v922, 1.0
    %v933 = vsub.f32 %v924, 1.0
    %v934 = vsub.f32 %v926, 1.0
    %v935 = vsel %vm903, %v895, %v927
    %v936 = vsel %vm904, %v896, %v928
    %v937 = vsel %vm905, %v897, %v929
    %v938 = vsel %vm906, %v898, %v930
    %v939 = vsel %vm907, %v899, %v931
    %v940 = vsel %vm908, %v900, %v932
    %v941 = vsel %vm909, %v901, %v933
    %v942 = vsel %vm910, %v902, %v934
    %943 = vset.pattern.permute.xlu0 2
    %944 = vperm.xlu0 %943, %v280
    %v945 = vpop.permute.xlu0 %944
    %947 = vset.pattern.permute.xlu0 2
    %948 = vperm.xlu0 %947, %v285
    %v949 = vpop.permute.xlu0 %948
    %951 = vset.pattern.permute.xlu0 2
    %952 = vperm.xlu0 %951, %v290
    %v953 = vpop.permute.xlu0 %952
    %955 = vset.pattern.permute.xlu0 2
    %956 = vperm.xlu0 %955, %v295
    %v957 = vpop.permute.xlu0 %956
    %959 = vset.pattern.permute.xlu0 2
    %960 = vperm.xlu0 %959, %v300
    %v961 = vpop.permute.xlu0 %960
    %963 = vset.pattern.permute.xlu0 2
    %964 = vperm.xlu0 %963, %v305
    %v965 = vpop.permute.xlu0 %964
    %967 = vset.pattern.permute.xlu0 2
    %968 = vperm.xlu0 %967, %v310
    %v969 = vpop.permute.xlu0 %968
    %971 = vset.pattern.permute.xlu0 2
    %972 = vperm.xlu0 %971, %v315
    %v973 = vpop.permute.xlu0 %972
    %v975 = vlaneseq
    %v976 = vshrl.u32 %v975, 7
    %v977 = vsub.s32 2, %v976
    %v978 = vrot.slane %v389, %v977
    %v979 = vadd.f32 %v945, %v978
    %v980 = vadd.f32 %v949, %v978
    %v981 = vadd.f32 %v953, %v978
    %v982 = vadd.f32 %v957, %v978
    %v983 = vadd.f32 %v961, %v978
    %v984 = vadd.f32 %v965, %v978
    %v985 = vadd.f32 %v969, %v978
    %v986 = vadd.f32 %v973, %v978
    %vm987 = vcmp.ge.f32.partialorder %v979, 0.0
    %vm988 = vcmp.ge.f32.partialorder %v980, 0.0
    %vm989 = vcmp.ge.f32.partialorder %v981, 0.0
    %vm990 = vcmp.ge.f32.partialorder %v982, 0.0
    %vm991 = vcmp.ge.f32.partialorder %v983, 0.0
    %vm992 = vcmp.ge.f32.partialorder %v984, 0.0
    %vm993 = vcmp.ge.f32.partialorder %v985, 0.0
    %vm994 = vcmp.ge.f32.partialorder %v986, 0.0
    %v995 = vmul.f32 %v979, 0.2
    %v996 = vmul.f32 %v980, 0.2
    %v997 = vmul.f32 %v981, 0.2
    %v998 = vmul.f32 %v982, 0.2
    %v999 = vmul.f32 %v983, 0.2
    %v1000 = vmul.f32 %v984, 0.2
    %v1001 = vmul.f32 %v985, 0.2
    %v1002 = vmul.f32 %v986, 0.2
    %v1003 = vsel %vm987, %v979, %v995
    %v1004 = vsel %vm988, %v980, %v996
    %v1005 = vsel %vm989, %v981, %v997
    %v1006 = vsel %vm990, %v982, %v998
    %v1007 = vsel %vm991, %v983, %v999
    %v1008 = vsel %vm992, %v984, %v1000
    %v1009 = vsel %vm993, %v985, %v1001
    %v1010 = vsel %vm994, %v986, %v1002
    %v1011 = vsub.f32 0.0, %v1003
    %v1012 = vsub.f32 0.0, %v1004
    %v1013 = vsub.f32 0.0, %v1005
    %v1014 = vsub.f32 0.0, %v1006
    %v1015 = vsub.f32 0.0, %v1007
    %v1016 = vsub.f32 0.0, %v1008
    %v1017 = vsub.f32 0.0, %v1009
    %v1018 = vsub.f32 0.0, %v1010
    %v1019 = vsel %vm44, %v1011, -1e+30
    %v1020 = vsel %vm45, %v1012, -1e+30
    %v1021 = vsel %vm46, %v1013, -1e+30
    %v1022 = vsel %vm47, %v1014, -1e+30
    %v1023 = vsel %vm48, %v1015, -1e+30
    %v1024 = vsel %vm49, %v1016, -1e+30
    %v1025 = vsel %vm50, %v1017, -1e+30
    %v1026 = vsel %vm51, %v1018, -1e+30
    %v1027 = vmul.f32 %v1019, 1.442695
    %v1028 = vpow.pop %v1027
    %v1029 = vmul.f32 %v1020, 1.442695
    %v1030 = vpow.pop %v1029
    %v1031 = vmul.f32 %v1021, 1.442695
    %v1032 = vpow.pop %v1031
    %v1033 = vmul.f32 %v1022, 1.442695
    %v1034 = vpow.pop %v1033
    %v1035 = vmul.f32 %v1023, 1.442695
    %v1036 = vpow.pop %v1035
    %v1037 = vmul.f32 %v1024, 1.442695
    %v1038 = vpow.pop %v1037
    %v1039 = vmul.f32 %v1025, 1.442695
    %v1040 = vpow.pop %v1039
    %v1041 = vmul.f32 %v1026, 1.442695
    %v1042 = vpow.pop %v1041
    %v1043 = vsel %vm500, %v1028, 0.0
    %1044 = vadd.xlane.f32.xlu0 %v1043
    %v1045 = vpop.xlane.xlu0 %1044
    %v1046 = vsel %vm500, %v1030, 0.0
    %1047 = vadd.xlane.f32.xlu0 %v1046
    %v1048 = vpop.xlane.xlu0 %1047
    %v1049 = vsel %vm500, %v1032, 0.0
    %1050 = vadd.xlane.f32.xlu0 %v1049
    %v1051 = vpop.xlane.xlu0 %1050
    %v1052 = vsel %vm500, %v1034, 0.0
    %1053 = vadd.xlane.f32.xlu0 %v1052
    %v1054 = vpop.xlane.xlu0 %1053
    %v1055 = vsel %vm500, %v1036, 0.0
    %1056 = vadd.xlane.f32.xlu0 %v1055
    %v1057 = vpop.xlane.xlu0 %1056
    %v1058 = vsel %vm500, %v1038, 0.0
    %1059 = vadd.xlane.f32.xlu0 %v1058
    %v1060 = vpop.xlane.xlu0 %1059
    %v1061 = vsel %vm500, %v1040, 0.0
    %1062 = vadd.xlane.f32.xlu0 %v1061
    %v1063 = vpop.xlane.xlu0 %1062
    %v1064 = vsel %vm500, %v1042, 0.0
    %1065 = vadd.xlane.f32.xlu0 %v1064
    %v1066 = vpop.xlane.xlu0 %1065
    %v1067 = vpack.c.bf16 %v1030, %v1028
    %v1068 = vpack.c.bf16 %v1034, %v1032
    %v1069 = vpack.c.bf16 %v1038, %v1036
    %v1070 = vpack.c.bf16 %v1042, %v1040
    %1071 = vrot.lane.b32.xlu0 %v529, 112
    %v1072 = vpop.permute.xlu0 %1071
    %1073 = vrot.lane.b32.xlu0 %v530, 112
    %v1074 = vpop.permute.xlu0 %1073
    %1075 = vrot.lane.b32.xlu0 %v531, 112
    %v1076 = vpop.permute.xlu0 %1075
    %1077 = vrot.lane.b32.xlu0 %v532, 112
    %v1078 = vpop.permute.xlu0 %1077
    %v1084 = vsel %vm500, %v1067, 0
    %v1087 = vsel %vm500, %v1068, 0
    %v1090 = vsel %vm500, %v1069, 0
    %v1093 = vsel %vm500, %v1070, 0
    %1095 = vmatprep.subr.bf16.mxu0 0
    %1096 = vmatpush1.bf16.msra.mxu0 %v1072
    %1097 = vmatprep.subr.bf16.mxu0 0
    %1098 = vmatpush1.bf16.msra.mxu0 %v1074
    %1099 = vmatprep.subr.bf16.mxu0 0
    %1100 = vmatpush1.bf16.msra.mxu0 %v1076
    %1101 = vmatprep.subr.bf16.mxu0 0
    %1102 = vmatpush1.bf16.msra.mxu0 %v1078
    %1103 = vmatprep.subr.bf16.mxu0 0
    %1104 = vmatpush1.bf16.msra.mxu0 0
    %1105 = vmatprep.subr.bf16.mxu0 0
    %1106 = vmatpush1.bf16.msra.mxu0 0
    %1107 = vmatprep.subr.bf16.mxu0 0
    %1108 = vmatpush1.bf16.msra.mxu0 0
    %1109 = vmatprep.subr.bf16.mxu0 0
    %1110 = vmatpush1.bf16.msra.mxu0 0
    %1111 = vmatprep.subr.bf16.mxu0 0
    %1112 = vmatpush1.bf16.msra.mxu0 0
    %1113 = vmatprep.subr.bf16.mxu0 0
    %1114 = vmatpush1.bf16.msra.mxu0 0
    %1115 = vmatprep.subr.bf16.mxu0 0
    %1116 = vmatpush1.bf16.msra.mxu0 0
    %1117 = vmatprep.subr.bf16.mxu0 0
    %1118 = vmatpush1.bf16.msra.mxu0 0
    %1119 = vmatprep.subr.bf16.mxu0 0
    %1120 = vmatpush1.bf16.msra.mxu0 0
    %1121 = vmatprep.subr.bf16.mxu0 0
    %1122 = vmatpush1.bf16.msra.mxu0 0
    %1123 = vmatprep.subr.bf16.mxu0 0
    %1124 = vmatpush1.bf16.msra.mxu0 0
    %1125 = vmatprep.subr.bf16.mxu0 0
    %1126 = vmatpush1.bf16.msra.mxu0 0
    %1127 = vmatprep.mubr.bf16.mxu0 0
    %1128 = vmatmul.mubr.bf16.gmra.mrb[0].mxu0 %v1084
    %v1129 = vpop.f32.mrb[0].mxu0
    %v1130 = vadd.f32 0.0, %v1129
    %v1131 = vpop.f32.mrb[0].mxu0
    %v1132 = vpop.f32.mrb[0].mxu0
    %v1133 = vadd.f32 0.0, %v1132
    %v1134 = vpop.f32.mrb[0].mxu0
    %1135 = vmatprep.mubr.bf16.mxu0 0
    %1136 = vmatmul.mubr.bf16.gmra.mrb[0].mxu0 %v1087
    %v1137 = vpop.f32.mrb[0].mxu0
    %v1138 = vadd.f32 0.0, %v1137
    %v1139 = vpop.f32.mrb[0].mxu0
    %v1140 = vpop.f32.mrb[0].mxu0
    %v1141 = vadd.f32 0.0, %v1140
    %v1142 = vpop.f32.mrb[0].mxu0
    %1143 = vmatprep.mubr.bf16.mxu0 0
    %1144 = vmatmul.mubr.bf16.gmra.mrb[0].mxu0 %v1090
    %v1145 = vpop.f32.mrb[0].mxu0
    %v1146 = vadd.f32 0.0, %v1145
    %v1147 = vpop.f32.mrb[0].mxu0
    %v1148 = vpop.f32.mrb[0].mxu0
    %v1149 = vadd.f32 0.0, %v1148
    %v1150 = vpop.f32.mrb[0].mxu0
    %1151 = vmatprep.mubr.bf16.mxu0 0
    %1152 = vmatmul.mubr.bf16.gmra.mrb[0].mxu0 %v1093
    %v1153 = vpop.f32.mrb[0].mxu0
    %v1154 = vadd.f32 0.0, %v1153
    %v1155 = vpop.f32.mrb[0].mxu0
    %v1156 = vpop.f32.mrb[0].mxu0
    %v1157 = vadd.f32 0.0, %v1156
    %v1158 = vpop.f32.mrb[0].mxu0
    %1159 = vdwg.mxu0
    %v1160 = vrcp.pop %v1045
    %v1161 = vrcp.pop %v1048
    %v1162 = vrcp.pop %v1051
    %v1163 = vrcp.pop %v1054
    %v1164 = vrcp.pop %v1057
    %v1165 = vrcp.pop %v1060
    %v1166 = vrcp.pop %v1063
    %v1167 = vrcp.pop %v1066
    %v1168 = vmul.f32 %v1130, %v1160
    %v1169 = vmul.f32 %v1133, %v1161
    %v1170 = vmul.f32 %v1138, %v1162
    %v1171 = vmul.f32 %v1141, %v1163
    %v1172 = vmul.f32 %v1146, %v1164
    %v1173 = vmul.f32 %v1149, %v1165
    %v1174 = vmul.f32 %v1154, %v1166
    %v1175 = vmul.f32 %v1157, %v1167
    %vm1176 = vcmp.gt.f32.partialorder %v1168, 0.0
    %vm1177 = vcmp.gt.f32.partialorder %v1169, 0.0
    %vm1178 = vcmp.gt.f32.partialorder %v1170, 0.0
    %vm1179 = vcmp.gt.f32.partialorder %v1171, 0.0
    %vm1180 = vcmp.gt.f32.partialorder %v1172, 0.0
    %vm1181 = vcmp.gt.f32.partialorder %v1173, 0.0
    %vm1182 = vcmp.gt.f32.partialorder %v1174, 0.0
    %vm1183 = vcmp.gt.f32.partialorder %v1175, 0.0
    %v1184 = vmul.f32 %v1168, 1.442695
    %v1185 = vpow.pop %v1184
    %v1186 = vmul.f32 %v1169, 1.442695
    %v1187 = vpow.pop %v1186
    %v1188 = vmul.f32 %v1170, 1.442695
    %v1189 = vpow.pop %v1188
    %v1190 = vmul.f32 %v1171, 1.442695
    %v1191 = vpow.pop %v1190
    %v1192 = vmul.f32 %v1172, 1.442695
    %v1193 = vpow.pop %v1192
    %v1194 = vmul.f32 %v1173, 1.442695
    %v1195 = vpow.pop %v1194
    %v1196 = vmul.f32 %v1174, 1.442695
    %v1197 = vpow.pop %v1196
    %v1198 = vmul.f32 %v1175, 1.442695
    %v1199 = vpow.pop %v1198
    %v1200 = vsub.f32 %v1185, 1.0
    %v1201 = vsub.f32 %v1187, 1.0
    %v1202 = vsub.f32 %v1189, 1.0
    %v1203 = vsub.f32 %v1191, 1.0
    %v1204 = vsub.f32 %v1193, 1.0
    %v1205 = vsub.f32 %v1195, 1.0
    %v1206 = vsub.f32 %v1197, 1.0
    %v1207 = vsub.f32 %v1199, 1.0
    %v1208 = vsel %vm1176, %v1168, %v1200
    %v1209 = vsel %vm1177, %v1169, %v1201
    %v1210 = vsel %vm1178, %v1170, %v1202
    %v1211 = vsel %vm1179, %v1171, %v1203
    %v1212 = vsel %vm1180, %v1172, %v1204
    %v1213 = vsel %vm1181, %v1173, %v1205
    %v1214 = vsel %vm1182, %v1174, %v1206
    %v1215 = vsel %vm1183, %v1175, %v1207
    %1216 = vset.pattern.permute.xlu0 3
    %1217 = vperm.xlu0 %1216, %v280
    %v1218 = vpop.permute.xlu0 %1217
    %1220 = vset.pattern.permute.xlu0 3
    %1221 = vperm.xlu0 %1220, %v285
    %v1222 = vpop.permute.xlu0 %1221
    %1224 = vset.pattern.permute.xlu0 3
    %1225 = vperm.xlu0 %1224, %v290
    %v1226 = vpop.permute.xlu0 %1225
    %1228 = vset.pattern.permute.xlu0 3
    %1229 = vperm.xlu0 %1228, %v295
    %v1230 = vpop.permute.xlu0 %1229
    %1232 = vset.pattern.permute.xlu0 3
    %1233 = vperm.xlu0 %1232, %v300
    %v1234 = vpop.permute.xlu0 %1233
    %1236 = vset.pattern.permute.xlu0 3
    %1237 = vperm.xlu0 %1236, %v305
    %v1238 = vpop.permute.xlu0 %1237
    %1240 = vset.pattern.permute.xlu0 3
    %1241 = vperm.xlu0 %1240, %v310
    %v1242 = vpop.permute.xlu0 %1241
    %1244 = vset.pattern.permute.xlu0 3
    %1245 = vperm.xlu0 %1244, %v315
    %v1246 = vpop.permute.xlu0 %1245
    %v1248 = vlaneseq
    %v1249 = vshrl.u32 %v1248, 7
    %v1250 = vsub.s32 3, %v1249
    %v1251 = vrot.slane %v389, %v1250
    %v1252 = vadd.f32 %v1218, %v1251
    %v1253 = vadd.f32 %v1222, %v1251
    %v1254 = vadd.f32 %v1226, %v1251
    %v1255 = vadd.f32 %v1230, %v1251
    %v1256 = vadd.f32 %v1234, %v1251
    %v1257 = vadd.f32 %v1238, %v1251
    %v1258 = vadd.f32 %v1242, %v1251
    %v1259 = vadd.f32 %v1246, %v1251
    %vm1260 = vcmp.ge.f32.partialorder %v1252, 0.0
    %vm1261 = vcmp.ge.f32.partialorder %v1253, 0.0
    %vm1262 = vcmp.ge.f32.partialorder %v1254, 0.0
    %vm1263 = vcmp.ge.f32.partialorder %v1255, 0.0
    %vm1264 = vcmp.ge.f32.partialorder %v1256, 0.0
    %vm1265 = vcmp.ge.f32.partialorder %v1257, 0.0
    %vm1266 = vcmp.ge.f32.partialorder %v1258, 0.0
    %vm1267 = vcmp.ge.f32.partialorder %v1259, 0.0
    %v1268 = vmul.f32 %v1252, 0.2
    %v1269 = vmul.f32 %v1253, 0.2
    %v1270 = vmul.f32 %v1254, 0.2
    %v1271 = vmul.f32 %v1255, 0.2
    %v1272 = vmul.f32 %v1256, 0.2
    %v1273 = vmul.f32 %v1257, 0.2
    %v1274 = vmul.f32 %v1258, 0.2
    %v1275 = vmul.f32 %v1259, 0.2
    %v1276 = vsel %vm1260, %v1252, %v1268
    %v1277 = vsel %vm1261, %v1253, %v1269
    %v1278 = vsel %vm1262, %v1254, %v1270
    %v1279 = vsel %vm1263, %v1255, %v1271
    %v1280 = vsel %vm1264, %v1256, %v1272
    %v1281 = vsel %vm1265, %v1257, %v1273
    %v1282 = vsel %vm1266, %v1258, %v1274
    %v1283 = vsel %vm1267, %v1259, %v1275
    %v1284 = vsub.f32 0.0, %v1276
    %v1285 = vsub.f32 0.0, %v1277
    %v1286 = vsub.f32 0.0, %v1278
    %v1287 = vsub.f32 0.0, %v1279
    %v1288 = vsub.f32 0.0, %v1280
    %v1289 = vsub.f32 0.0, %v1281
    %v1290 = vsub.f32 0.0, %v1282
    %v1291 = vsub.f32 0.0, %v1283
    %v1292 = vsel %vm44, %v1284, -1e+30
    %v1293 = vsel %vm45, %v1285, -1e+30
    %v1294 = vsel %vm46, %v1286, -1e+30
    %v1295 = vsel %vm47, %v1287, -1e+30
    %v1296 = vsel %vm48, %v1288, -1e+30
    %v1297 = vsel %vm49, %v1289, -1e+30
    %v1298 = vsel %vm50, %v1290, -1e+30
    %v1299 = vsel %vm51, %v1291, -1e+30
    %v1300 = vmul.f32 %v1292, 1.442695
    %v1301 = vpow.pop %v1300
    %v1302 = vmul.f32 %v1293, 1.442695
    %v1303 = vpow.pop %v1302
    %v1304 = vmul.f32 %v1294, 1.442695
    %v1305 = vpow.pop %v1304
    %v1306 = vmul.f32 %v1295, 1.442695
    %v1307 = vpow.pop %v1306
    %v1308 = vmul.f32 %v1296, 1.442695
    %v1309 = vpow.pop %v1308
    %v1310 = vmul.f32 %v1297, 1.442695
    %v1311 = vpow.pop %v1310
    %v1312 = vmul.f32 %v1298, 1.442695
    %v1313 = vpow.pop %v1312
    %v1314 = vmul.f32 %v1299, 1.442695
    %v1315 = vpow.pop %v1314
    %v1316 = vsel %vm500, %v1301, 0.0
    %1317 = vadd.xlane.f32.xlu0 %v1316
    %v1318 = vpop.xlane.xlu0 %1317
    %v1319 = vsel %vm500, %v1303, 0.0
    %1320 = vadd.xlane.f32.xlu0 %v1319
    %v1321 = vpop.xlane.xlu0 %1320
    %v1322 = vsel %vm500, %v1305, 0.0
    %1323 = vadd.xlane.f32.xlu0 %v1322
    %v1324 = vpop.xlane.xlu0 %1323
    %v1325 = vsel %vm500, %v1307, 0.0
    %1326 = vadd.xlane.f32.xlu0 %v1325
    %v1327 = vpop.xlane.xlu0 %1326
    %v1328 = vsel %vm500, %v1309, 0.0
    %1329 = vadd.xlane.f32.xlu0 %v1328
    %v1330 = vpop.xlane.xlu0 %1329
    %v1331 = vsel %vm500, %v1311, 0.0
    %1332 = vadd.xlane.f32.xlu0 %v1331
    %v1333 = vpop.xlane.xlu0 %1332
    %v1334 = vsel %vm500, %v1313, 0.0
    %1335 = vadd.xlane.f32.xlu0 %v1334
    %v1336 = vpop.xlane.xlu0 %1335
    %v1337 = vsel %vm500, %v1315, 0.0
    %1338 = vadd.xlane.f32.xlu0 %v1337
    %v1339 = vpop.xlane.xlu0 %1338
    %v1340 = vpack.c.bf16 %v1303, %v1301
    %v1341 = vpack.c.bf16 %v1307, %v1305
    %v1342 = vpack.c.bf16 %v1311, %v1309
    %v1343 = vpack.c.bf16 %v1315, %v1313
    %1344 = vrot.lane.b32.xlu0 %v529, 104
    %v1345 = vpop.permute.xlu0 %1344
    %1346 = vrot.lane.b32.xlu0 %v530, 104
    %v1347 = vpop.permute.xlu0 %1346
    %1348 = vrot.lane.b32.xlu0 %v531, 104
    %v1349 = vpop.permute.xlu0 %1348
    %1350 = vrot.lane.b32.xlu0 %v532, 104
    %v1351 = vpop.permute.xlu0 %1350
    %v1357 = vsel %vm500, %v1340, 0
    %v1360 = vsel %vm500, %v1341, 0
    %v1363 = vsel %vm500, %v1342, 0
    %v1366 = vsel %vm500, %v1343, 0
    %1368 = vmatprep.subr.bf16.mxu0 0
    %1369 = vmatpush1.bf16.msra.mxu0 %v1345
    %1370 = vmatprep.subr.bf16.mxu0 0
    %1371 = vmatpush1.bf16.msra.mxu0 %v1347
    %1372 = vmatprep.subr.bf16.mxu0 0
    %1373 = vmatpush1.bf16.msra.mxu0 %v1349
    %1374 = vmatprep.subr.bf16.mxu0 0
    %1375 = vmatpush1.bf16.msra.mxu0 %v1351
    %1376 = vmatprep.subr.bf16.mxu0 0
    %1377 = vmatpush1.bf16.msra.mxu0 0
    %1378 = vmatprep.subr.bf16.mxu0 0
    %1379 = vmatpush1.bf16.msra.mxu0 0
    %1380 = vmatprep.subr.bf16.mxu0 0
    %1381 = vmatpush1.bf16.msra.mxu0 0
    %1382 = vmatprep.subr.bf16.mxu0 0
    %1383 = vmatpush1.bf16.msra.mxu0 0
    %1384 = vmatprep.subr.bf16.mxu0 0
    %1385 = vmatpush1.bf16.msra.mxu0 0
    %1386 = vmatprep.subr.bf16.mxu0 0
    %1387 = vmatpush1.bf16.msra.mxu0 0
    %1388 = vmatprep.subr.bf16.mxu0 0
    %1389 = vmatpush1.bf16.msra.mxu0 0
    %1390 = vmatprep.subr.bf16.mxu0 0
    %1391 = vmatpush1.bf16.msra.mxu0 0
    %1392 = vmatprep.subr.bf16.mxu0 0
    %1393 = vmatpush1.bf16.msra.mxu0 0
    %1394 = vmatprep.subr.bf16.mxu0 0
    %1395 = vmatpush1.bf16.msra.mxu0 0
    %1396 = vmatprep.subr.bf16.mxu0 0
    %1397 = vmatpush1.bf16.msra.mxu0 0
    %1398 = vmatprep.subr.bf16.mxu0 0
    %1399 = vmatpush1.bf16.msra.mxu0 0
    %1400 = vmatprep.mubr.bf16.mxu0 0
    %1401 = vmatmul.mubr.bf16.gmra.mrb[0].mxu0 %v1357
    %v1402 = vpop.f32.mrb[0].mxu0
    %v1403 = vadd.f32 0.0, %v1402
    %v1404 = vpop.f32.mrb[0].mxu0
    %v1405 = vpop.f32.mrb[0].mxu0
    %v1406 = vadd.f32 0.0, %v1405
    %v1407 = vpop.f32.mrb[0].mxu0
    %1408 = vmatprep.mubr.bf16.mxu0 0
    %1409 = vmatmul.mubr.bf16.gmra.mrb[0].mxu0 %v1360
    %v1410 = vpop.f32.mrb[0].mxu0
    %v1411 = vadd.f32 0.0, %v1410
    %v1412 = vpop.f32.mrb[0].mxu0
    %v1413 = vpop.f32.mrb[0].mxu0
    %v1414 = vadd.f32 0.0, %v1413
    %v1415 = vpop.f32.mrb[0].mxu0
    %1416 = vmatprep.mubr.bf16.mxu0 0
    %1417 = vmatmul.mubr.bf16.gmra.mrb[0].mxu0 %v1363
    %v1418 = vpop.f32.mrb[0].mxu0
    %v1419 = vadd.f32 0.0, %v1418
    %v1420 = vpop.f32.mrb[0].mxu0
    %v1421 = vpop.f32.mrb[0].mxu0
    %v1422 = vadd.f32 0.0, %v1421
    %v1423 = vpop.f32.mrb[0].mxu0
    %1424 = vmatprep.mubr.bf16.mxu0 0
    %1425 = vmatmul.mubr.bf16.gmra.mrb[0].mxu0 %v1366
    %v1426 = vpop.f32.mrb[0].mxu0
    %v1427 = vadd.f32 0.0, %v1426
    %v1428 = vpop.f32.mrb[0].mxu0
    %v1429 = vpop.f32.mrb[0].mxu0
    %v1430 = vadd.f32 0.0, %v1429
    %v1431 = vpop.f32.mrb[0].mxu0
    %1432 = vdwg.mxu0
    %v1433 = vrcp.pop %v1318
    %v1434 = vrcp.pop %v1321
    %v1435 = vrcp.pop %v1324
    %v1436 = vrcp.pop %v1327
    %v1437 = vrcp.pop %v1330
    %v1438 = vrcp.pop %v1333
    %v1439 = vrcp.pop %v1336
    %v1440 = vrcp.pop %v1339
    %v1441 = vmul.f32 %v1403, %v1433
    %v1442 = vmul.f32 %v1406, %v1434
    %v1443 = vmul.f32 %v1411, %v1435
    %v1444 = vmul.f32 %v1414, %v1436
    %v1445 = vmul.f32 %v1419, %v1437
    %v1446 = vmul.f32 %v1422, %v1438
    %v1447 = vmul.f32 %v1427, %v1439
    %v1448 = vmul.f32 %v1430, %v1440
    %vm1449 = vcmp.gt.f32.partialorder %v1441, 0.0
    %vm1450 = vcmp.gt.f32.partialorder %v1442, 0.0
    %vm1451 = vcmp.gt.f32.partialorder %v1443, 0.0
    %vm1452 = vcmp.gt.f32.partialorder %v1444, 0.0
    %vm1453 = vcmp.gt.f32.partialorder %v1445, 0.0
    %vm1454 = vcmp.gt.f32.partialorder %v1446, 0.0
    %vm1455 = vcmp.gt.f32.partialorder %v1447, 0.0
    %vm1456 = vcmp.gt.f32.partialorder %v1448, 0.0
    %v1457 = vmul.f32 %v1441, 1.442695
    %v1458 = vpow.pop %v1457
    %v1459 = vmul.f32 %v1442, 1.442695
    %v1460 = vpow.pop %v1459
    %v1461 = vmul.f32 %v1443, 1.442695
    %v1462 = vpow.pop %v1461
    %v1463 = vmul.f32 %v1444, 1.442695
    %v1464 = vpow.pop %v1463
    %v1465 = vmul.f32 %v1445, 1.442695
    %v1466 = vpow.pop %v1465
    %v1467 = vmul.f32 %v1446, 1.442695
    %v1468 = vpow.pop %v1467
    %v1469 = vmul.f32 %v1447, 1.442695
    %v1470 = vpow.pop %v1469
    %v1471 = vmul.f32 %v1448, 1.442695
    %v1472 = vpow.pop %v1471
    %v1473 = vsub.f32 %v1458, 1.0
    %v1474 = vsub.f32 %v1460, 1.0
    %v1475 = vsub.f32 %v1462, 1.0
    %v1476 = vsub.f32 %v1464, 1.0
    %v1477 = vsub.f32 %v1466, 1.0
    %v1478 = vsub.f32 %v1468, 1.0
    %v1479 = vsub.f32 %v1470, 1.0
    %v1480 = vsub.f32 %v1472, 1.0
    %v1481 = vsel %vm1449, %v1441, %v1473
    %v1482 = vsel %vm1450, %v1442, %v1474
    %v1483 = vsel %vm1451, %v1443, %v1475
    %v1484 = vsel %vm1452, %v1444, %v1476
    %v1485 = vsel %vm1453, %v1445, %v1477
    %v1486 = vsel %vm1454, %v1446, %v1478
    %v1487 = vsel %vm1455, %v1447, %v1479
    %v1488 = vsel %vm1456, %v1448, %v1480
    %1497 = vrot.lane.b32.xlu0 %v935, 8
    %v1498 = vpop.permute.xlu0 %1497
    %1499 = vrot.lane.b32.xlu0 %v936, 8
    %v1500 = vpop.permute.xlu0 %1499
    %1501 = vrot.lane.b32.xlu0 %v937, 8
    %v1502 = vpop.permute.xlu0 %1501
    %1503 = vrot.lane.b32.xlu0 %v938, 8
    %v1504 = vpop.permute.xlu0 %1503
    %1505 = vrot.lane.b32.xlu0 %v939, 8
    %v1506 = vpop.permute.xlu0 %1505
    %1507 = vrot.lane.b32.xlu0 %v940, 8
    %v1508 = vpop.permute.xlu0 %1507
    %1509 = vrot.lane.b32.xlu0 %v941, 8
    %v1510 = vpop.permute.xlu0 %1509
    %1511 = vrot.lane.b32.xlu0 %v942, 8
    %v1512 = vpop.permute.xlu0 %1511
    %1529 = vrot.lane.b32.xlu0 %v1208, 16
    %v1530 = vpop.permute.xlu0 %1529
    %1531 = vrot.lane.b32.xlu0 %v1209, 16
    %v1532 = vpop.permute.xlu0 %1531
    %1533 = vrot.lane.b32.xlu0 %v1210, 16
    %v1534 = vpop.permute.xlu0 %1533
    %1535 = vrot.lane.b32.xlu0 %v1211, 16
    %v1536 = vpop.permute.xlu0 %1535
    %1537 = vrot.lane.b32.xlu0 %v1212, 16
    %v1538 = vpop.permute.xlu0 %1537
    %1539 = vrot.lane.b32.xlu0 %v1213, 16
    %v1540 = vpop.permute.xlu0 %1539
    %1541 = vrot.lane.b32.xlu0 %v1214, 16
    %v1542 = vpop.permute.xlu0 %1541
    %1543 = vrot.lane.b32.xlu0 %v1215, 16
    %v1544 = vpop.permute.xlu0 %1543
    %1561 = vrot.lane.b32.xlu0 %v1481, 24
    %v1562 = vpop.permute.xlu0 %1561
    %1563 = vrot.lane.b32.xlu0 %v1482, 24
    %v1564 = vpop.permute.xlu0 %1563
    %1565 = vrot.lane.b32.xlu0 %v1483, 24
    %v1566 = vpop.permute.xlu0 %1565
    %1567 = vrot.lane.b32.xlu0 %v1484, 24
    %v1568 = vpop.permute.xlu0 %1567
    %1569 = vrot.lane.b32.xlu0 %v1485, 24
    %v1570 = vpop.permute.xlu0 %1569
    %1571 = vrot.lane.b32.xlu0 %v1486, 24
    %v1572 = vpop.permute.xlu0 %1571
    %1573 = vrot.lane.b32.xlu0 %v1487, 24
    %v1574 = vpop.permute.xlu0 %1573
    %1575 = vrot.lane.b32.xlu0 %v1488, 24
    %v1576 = vpop.permute.xlu0 %1575
    %vm1585 = vcmask 64512
    %v1586 = vsel %vm1585, %v658, %v1498
    %v1587 = vsel %vm1585, %v659, %v1500
    %v1588 = vsel %vm1585, %v660, %v1502
    %v1589 = vsel %vm1585, %v661, %v1504
    %v1590 = vsel %vm1585, %v662, %v1506
    %v1591 = vsel %vm1585, %v663, %v1508
    %v1592 = vsel %vm1585, %v664, %v1510
    %v1593 = vsel %vm1585, %v665, %v1512
    %v1594 = vsel %vm54, %v1586, %v1530
    %v1595 = vsel %vm54, %v1587, %v1532
    %v1596 = vsel %vm54, %v1588, %v1534
    %v1597 = vsel %vm54, %v1589, %v1536
    %v1598 = vsel %vm54, %v1590, %v1538
    %v1599 = vsel %vm54, %v1591, %v1540
    %v1600 = vsel %vm54, %v1592, %v1542
    %v1601 = vsel %vm54, %v1593, %v1544
    %vm1602 = vcmask 195584
    %v1603 = vsel %vm1602, %v1594, %v1562
    %v1604 = vsel %vm1602, %v1595, %v1564
    %v1605 = vsel %vm1602, %v1596, %v1566
    %v1606 = vsel %vm1602, %v1597, %v1568
    %v1607 = vsel %vm1602, %v1598, %v1570
    %v1608 = vsel %vm1602, %v1599, %v1572
    %v1609 = vsel %vm1602, %v1600, %v1574
    %v1610 = vsel %vm1602, %v1601, %v1576
    %v1611 = vld [vmem:[%s5] sm:$0xff]
    %v1612 = vld [vmem:[%s5 + $0x8] sm:$0xff]
    %v1613 = vld [vmem:[%s5 + $0x10] sm:$0xff]
    %v1614 = vld [vmem:[%s5 + $0x18] sm:$0xff]
    %v1616 = vsel %vm188, %v1603, 0
    %v1619 = vsel %vm188, %v1604, 0
    %v1622 = vsel %vm188, %v1605, 0
    %v1625 = vsel %vm188, %v1606, 0
    %v1628 = vsel %vm188, %v1607, 0
    %v1631 = vsel %vm188, %v1608, 0
    %v1634 = vsel %vm188, %v1609, 0
    %v1637 = vsel %vm188, %v1610, 0
    %1639 = vmatprep.subr.mxu0 0.0
    %1640 = vmatpush1.msra.mxu0 %v1611
    %1641 = vmatprep.subr.mxu0 0.0
    %1642 = vmatpush1.msra.mxu0 %v1612
    %1643 = vmatprep.subr.mxu0 0.0
    %1644 = vmatpush1.msra.mxu0 %v1613
    %1645 = vmatprep.subr.mxu0 0.0
    %1646 = vmatpush1.msra.mxu0 %v1614
    %1647 = vmatprep.subr.mxu0 0.0
    %1648 = vmatpush1.msra.mxu0 0.0
    %1649 = vmatprep.subr.mxu0 0.0
    %1650 = vmatpush1.msra.mxu0 0.0
    %1651 = vmatprep.subr.mxu0 0.0
    %1652 = vmatpush1.msra.mxu0 0.0
    %1653 = vmatprep.subr.mxu0 0.0
    %1654 = vmatpush1.msra.mxu0 0.0
    %1655 = vmatprep.subr.mxu0 0.0
    %1656 = vmatpush1.msra.mxu0 0.0
    %1657 = vmatprep.subr.mxu0 0.0
    %1658 = vmatpush1.msra.mxu0 0.0
    %1659 = vmatprep.subr.mxu0 0.0
    %1660 = vmatpush1.msra.mxu0 0.0
    %1661 = vmatprep.subr.mxu0 0.0
    %1662 = vmatpush1.msra.mxu0 0.0
    %1663 = vmatprep.subr.mxu0 0.0
    %1664 = vmatpush1.msra.mxu0 0.0
    %1665 = vmatprep.subr.mxu0 0.0
    %1666 = vmatpush1.msra.mxu0 0.0
    %1667 = vmatprep.subr.mxu0 0.0
    %1668 = vmatpush1.msra.mxu0 0.0
    %1669 = vmatprep.subr.mxu0 0.0
    %1670 = vmatpush1.msra.mxu0 0.0
    %1671 = vmatprep.subr.mxu0 0.0
    %1672 = vmatpush1.msra.mxu0 0.0
    %1673 = vmatprep.subr.mxu0 0.0
    %1674 = vmatpush1.msra.mxu0 0.0
    %1675 = vmatprep.subr.mxu0 0.0
    %1676 = vmatpush1.msra.mxu0 0.0
    %1677 = vmatprep.subr.mxu0 0.0
    %1678 = vmatpush1.msra.mxu0 0.0
    %1679 = vmatprep.subr.mxu0 0.0
    %1680 = vmatpush1.msra.mxu0 0.0
    %1681 = vmatprep.subr.mxu0 0.0
    %1682 = vmatpush1.msra.mxu0 0.0
    %1683 = vmatprep.subr.mxu0 0.0
    %1684 = vmatpush1.msra.mxu0 0.0
    %1685 = vmatprep.subr.mxu0 0.0
    %1686 = vmatpush1.msra.mxu0 0.0
    %1687 = vmatprep.subr.mxu0 0.0
    %1688 = vmatpush1.msra.mxu0 0.0
    %1689 = vmatprep.subr.mxu0 0.0
    %1690 = vmatpush1.msra.mxu0 0.0
    %1691 = vmatprep.subr.mxu0 0.0
    %1692 = vmatpush1.msra.mxu0 0.0
    %1693 = vmatprep.subr.mxu0 0.0
    %1694 = vmatpush1.msra.mxu0 0.0
    %1695 = vmatprep.subr.mxu0 0.0
    %1696 = vmatpush1.msra.mxu0 0.0
    %1697 = vmatprep.subr.mxu0 0.0
    %1698 = vmatpush1.msra.mxu0 0.0
    %1699 = vmatprep.subr.mxu0 0.0
    %1700 = vmatpush1.msra.mxu0 0.0
    %1701 = vmatprep.subr.mxu0 0.0
    %1702 = vmatpush1.msra.mxu0 0.0
    %1703 = vmatprep.mubr.f32.mxu0 0.0
    %1704 = vmatmul.mubr.f32.gmra.mrb[0].mxu0 %v1616
    %v1705 = vpop.f32.mrb[0].mxu0
    %v1706 = vadd.f32 0.0, %v1705
    %v1707 = vpop.f32.mrb[0].mxu0
    %1708 = vmatprep.mubr.f32.mxu0 0.0
    %1709 = vmatmul.mubr.f32.gmra.mrb[0].mxu0 %v1619
    %v1710 = vpop.f32.mrb[0].mxu0
    %v1711 = vadd.f32 0.0, %v1710
    %v1712 = vpop.f32.mrb[0].mxu0
    %1713 = vmatprep.mubr.f32.mxu0 0.0
    %1714 = vmatmul.mubr.f32.gmra.mrb[0].mxu0 %v1622
    %v1715 = vpop.f32.mrb[0].mxu0
    %v1716 = vadd.f32 0.0, %v1715
    %v1717 = vpop.f32.mrb[0].mxu0
    %1718 = vmatprep.mubr.f32.mxu0 0.0
    %1719 = vmatmul.mubr.f32.gmra.mrb[0].mxu0 %v1625
    %v1720 = vpop.f32.mrb[0].mxu0
    %v1721 = vadd.f32 0.0, %v1720
    %v1722 = vpop.f32.mrb[0].mxu0
    %1723 = vmatprep.mubr.f32.mxu0 0.0
    %1724 = vmatmul.mubr.f32.gmra.mrb[0].mxu0 %v1628
    %v1725 = vpop.f32.mrb[0].mxu0
    %v1726 = vadd.f32 0.0, %v1725
    %v1727 = vpop.f32.mrb[0].mxu0
    %1728 = vmatprep.mubr.f32.mxu0 0.0
    %1729 = vmatmul.mubr.f32.gmra.mrb[0].mxu0 %v1631
    %v1730 = vpop.f32.mrb[0].mxu0
    %v1731 = vadd.f32 0.0, %v1730
    %v1732 = vpop.f32.mrb[0].mxu0
    %1733 = vmatprep.mubr.f32.mxu0 0.0
    %1734 = vmatmul.mubr.f32.gmra.mrb[0].mxu0 %v1634
    %v1735 = vpop.f32.mrb[0].mxu0
    %v1736 = vadd.f32 0.0, %v1735
    %v1737 = vpop.f32.mrb[0].mxu0
    %1738 = vmatprep.mubr.f32.mxu0 0.0
    %1739 = vmatmul.mubr.f32.gmra.mrb[0].mxu0 %v1637
    %v1740 = vpop.f32.mrb[0].mxu0
    %v1741 = vadd.f32 0.0, %v1740
    %v1742 = vpop.f32.mrb[0].mxu0
    %1743 = vdwg.mxu0
    %v1744 = vld [vmem:[%s6] sm:$0x1]
    %v1746 = vlaneseq
    %v1747 = vshrl.u32 %v1746, 7
    %v1748 = vsub.s32 0, %v1747
    %v1749 = vrot.slane %v1744, %v1748
    %v1752 = vsel %vm500, %v36, 0
    %v1755 = vsel %vm500, %v37, 0
    %v1758 = vsel %vm500, %v38, 0
    %v1761 = vsel %vm500, %v39, 0
    %v1764 = vsel %vm500, %v40, 0
    %v1767 = vsel %vm500, %v41, 0
    %v1770 = vsel %vm500, %v42, 0
    %v1773 = vsel %vm500, %v43, 0
    %1775 = vmatprep.subr.mxu0 0.0
    %1776 = vmatpush1.msra.mxu0 %v1706
    %1777 = vmatprep.subr.mxu0 0.0
    %1778 = vmatpush1.msra.mxu0 %v1711
    %1779 = vmatprep.subr.mxu0 0.0
    %1780 = vmatpush1.msra.mxu0 %v1716
    %1781 = vmatprep.subr.mxu0 0.0
    %1782 = vmatpush1.msra.mxu0 %v1721
    %1783 = vmatprep.subr.mxu0 0.0
    %1784 = vmatpush1.msra.mxu0 %v1726
    %1785 = vmatprep.subr.mxu0 0.0
    %1786 = vmatpush1.msra.mxu0 %v1731
    %1787 = vmatprep.subr.mxu0 0.0
    %1788 = vmatpush1.msra.mxu0 %v1736
    %1789 = vmatprep.subr.mxu0 0.0
    %1790 = vmatpush1.msra.mxu0 %v1741
    %1791 = vmatprep.subr.mxu0 0.0
    %1792 = vmatpush1.msra.mxu0 0.0
    %1793 = vmatprep.subr.mxu0 0.0
    %1794 = vmatpush1.msra.mxu0 0.0
    %1795 = vmatprep.subr.mxu0 0.0
    %1796 = vmatpush1.msra.mxu0 0.0
    %1797 = vmatprep.subr.mxu0 0.0
    %1798 = vmatpush1.msra.mxu0 0.0
    %1799 = vmatprep.subr.mxu0 0.0
    %1800 = vmatpush1.msra.mxu0 0.0
    %1801 = vmatprep.subr.mxu0 0.0
    %1802 = vmatpush1.msra.mxu0 0.0
    %1803 = vmatprep.subr.mxu0 0.0
    %1804 = vmatpush1.msra.mxu0 0.0
    %1805 = vmatprep.subr.mxu0 0.0
    %1806 = vmatpush1.msra.mxu0 0.0
    %1807 = vmatprep.subr.mxu0 0.0
    %1808 = vmatpush1.msra.mxu0 0.0
    %1809 = vmatprep.subr.mxu0 0.0
    %1810 = vmatpush1.msra.mxu0 0.0
    %1811 = vmatprep.subr.mxu0 0.0
    %1812 = vmatpush1.msra.mxu0 0.0
    %1813 = vmatprep.subr.mxu0 0.0
    %1814 = vmatpush1.msra.mxu0 0.0
    %1815 = vmatprep.subr.mxu0 0.0
    %1816 = vmatpush1.msra.mxu0 0.0
    %1817 = vmatprep.subr.mxu0 0.0
    %1818 = vmatpush1.msra.mxu0 0.0
    %1819 = vmatprep.subr.mxu0 0.0
    %1820 = vmatpush1.msra.mxu0 0.0
    %1821 = vmatprep.subr.mxu0 0.0
    %1822 = vmatpush1.msra.mxu0 0.0
    %1823 = vmatprep.subr.mxu0 0.0
    %1824 = vmatpush1.msra.mxu0 0.0
    %1825 = vmatprep.subr.mxu0 0.0
    %1826 = vmatpush1.msra.mxu0 0.0
    %1827 = vmatprep.subr.mxu0 0.0
    %1828 = vmatpush1.msra.mxu0 0.0
    %1829 = vmatprep.subr.mxu0 0.0
    %1830 = vmatpush1.msra.mxu0 0.0
    %1831 = vmatprep.subr.mxu0 0.0
    %1832 = vmatpush1.msra.mxu0 0.0
    %1833 = vmatprep.subr.mxu0 0.0
    %1834 = vmatpush1.msra.mxu0 0.0
    %1835 = vmatprep.subr.mxu0 0.0
    %1836 = vmatpush1.msra.mxu0 0.0
    %1837 = vmatprep.subr.mxu0 0.0
    %1838 = vmatpush1.msra.mxu0 0.0
    %1839 = vmatprep.mubr.f32.mxu0 0.0
    %1840 = vmatmul.mubr.f32.gmra.mrb[0].mxu0 %v1752
    %v1841 = vpop.f32.mrb[0].mxu0
    %v1842 = vadd.f32 %v1749, %v1841
    %v1843 = vpop.f32.mrb[0].mxu0
    %1844 = vmatprep.mubr.f32.mxu0 0.0
    %1845 = vmatmul.mubr.f32.gmra.mrb[0].mxu0 %v1755
    %v1846 = vpop.f32.mrb[0].mxu0
    %v1847 = vadd.f32 %v1749, %v1846
    %v1848 = vpop.f32.mrb[0].mxu0
    %1849 = vmatprep.mubr.f32.mxu0 0.0
    %1850 = vmatmul.mubr.f32.gmra.mrb[0].mxu0 %v1758
    %v1851 = vpop.f32.mrb[0].mxu0
    %v1852 = vadd.f32 %v1749, %v1851
    %v1853 = vpop.f32.mrb[0].mxu0
    %1854 = vmatprep.mubr.f32.mxu0 0.0
    %1855 = vmatmul.mubr.f32.gmra.mrb[0].mxu0 %v1761
    %v1856 = vpop.f32.mrb[0].mxu0
    %v1857 = vadd.f32 %v1749, %v1856
    %v1858 = vpop.f32.mrb[0].mxu0
    %1859 = vmatprep.mubr.f32.mxu0 0.0
    %1860 = vmatmul.mubr.f32.gmra.mrb[0].mxu0 %v1764
    %v1861 = vpop.f32.mrb[0].mxu0
    %v1862 = vadd.f32 %v1749, %v1861
    %v1863 = vpop.f32.mrb[0].mxu0
    %1864 = vmatprep.mubr.f32.mxu0 0.0
    %1865 = vmatmul.mubr.f32.gmra.mrb[0].mxu0 %v1767
    %v1866 = vpop.f32.mrb[0].mxu0
    %v1867 = vadd.f32 %v1749, %v1866
    %v1868 = vpop.f32.mrb[0].mxu0
    %1869 = vmatprep.mubr.f32.mxu0 0.0
    %1870 = vmatmul.mubr.f32.gmra.mrb[0].mxu0 %v1770
    %v1871 = vpop.f32.mrb[0].mxu0
    %v1872 = vadd.f32 %v1749, %v1871
    %v1873 = vpop.f32.mrb[0].mxu0
    %1874 = vmatprep.mubr.f32.mxu0 0.0
    %1875 = vmatmul.mubr.f32.gmra.mrb[0].mxu0 %v1773
    %v1876 = vpop.f32.mrb[0].mxu0
    %v1877 = vadd.f32 %v1749, %v1876
    %v1878 = vpop.f32.mrb[0].mxu0
    %1879 = vdwg.mxu0
    %vm1880 = vcmp.ge.f32.partialorder %v1842, 0.0
    %vm1881 = vcmp.ge.f32.partialorder %v1847, 0.0
    %vm1882 = vcmp.ge.f32.partialorder %v1852, 0.0
    %vm1883 = vcmp.ge.f32.partialorder %v1857, 0.0
    %vm1884 = vcmp.ge.f32.partialorder %v1862, 0.0
    %vm1885 = vcmp.ge.f32.partialorder %v1867, 0.0
    %vm1886 = vcmp.ge.f32.partialorder %v1872, 0.0
    %vm1887 = vcmp.ge.f32.partialorder %v1877, 0.0
    %v1888 = vmul.f32 %v1842, 0.01
    %v1889 = vmul.f32 %v1847, 0.01
    %v1890 = vmul.f32 %v1852, 0.01
    %v1891 = vmul.f32 %v1857, 0.01
    %v1892 = vmul.f32 %v1862, 0.01
    %v1893 = vmul.f32 %v1867, 0.01
    %v1894 = vmul.f32 %v1872, 0.01
    %v1895 = vmul.f32 %v1877, 0.01
    %v1896 = vsel %vm1880, %v1842, %v1888
    %v1897 = vsel %vm1881, %v1847, %v1889
    %v1898 = vsel %vm1882, %v1852, %v1890
    %v1899 = vsel %vm1883, %v1857, %v1891
    %v1900 = vsel %vm1884, %v1862, %v1892
    %v1901 = vsel %vm1885, %v1867, %v1893
    %v1902 = vsel %vm1886, %v1872, %v1894
    %v1903 = vsel %vm1887, %v1877, %v1895
    %1904 = vst [vmem:[#allocation2] sm:$0xff] %v1896
    %1905 = vst [vmem:[#allocation2 + $0x8] sm:$0xff] %v1897
    %1906 = vst [vmem:[#allocation2 + $0x10] sm:$0xff] %v1898
    %1907 = vst [vmem:[#allocation2 + $0x18] sm:$0xff] %v1899
    %1908 = vst [vmem:[#allocation2 + $0x20] sm:$0xff] %v1900
    %1909 = vst [vmem:[#allocation2 + $0x28] sm:$0xff] %v1901
    %1910 = vst [vmem:[#allocation2 + $0x30] sm:$0xff] %v1902
    %1911 = vst [vmem:[#allocation2 + $0x38] sm:$0xff] %v1903
    // Predicated region
    $region30: #{tpu_custom_call.1} parent=1 // pred_check
      _
    $region31: #{tpu_custom_call.1} parent=1 // pred_check_branch
      %1913 = sbr.rel (0) target = $region33
    $region32: #{tpu_custom_call.1} parent=1 // pred_region
      %s1915 = ssub.s32 1024, 1024
      %1916 = vsyncadd [#allocation3], %s1915
      %s1917 = sshll.u32 [#allocation2], 4
      %s1918 = int_to_ptr.vmem [resolvable:$true] %s1917
      %1923 = dma.vmem_to_hbm [thread:$0]  %s1918, 1024, %s7, [#allocation3], 128, 128, 8
    $region33: #{tpu_custom_call.1} parent=1 // pred_fallthru
      _
    // Predicated region
    $region34: #{tpu_custom_call.1} parent=1 // pred_check
      _
    $region35: #{tpu_custom_call.1} parent=1 // pred_check_branch
      %1925 = sbr.rel (0) target = $region37
    $region36: #{tpu_custom_call.1} parent=1 // pred_region
      %1926 = dma.done [#allocation3], 1024
    $region37: #{tpu_custom_call.1} parent=1 // pred_fallthru
      _
    %1927 = vsyncpa [#allocation3], 1

</llo_original>
